<compile_context>
chip_gen: v5e
topology: v5e:2x2
jax: 0.10.0
libtpu: 0.0.40
codegen_flags: <defaults>
</compile_context>

<pallas_src>
import jax
import jax.numpy as jnp
from jax import lax
from jax.experimental import pallas as pl
from jax.experimental.pallas import tpu as pltpu

HIDDEN = 150
OUT = 2
_LANE = 128
_SUBLANE = 8


def _round_up(n, m):
    return (n + m - 1) // m * m


def _vmem_footprint(tb, D, x_item, h_pad, w_item, out_cols, out_item):
    """Approximate VMEM bytes for one pipeline configuration."""
    x_tile = tb * D * x_item
    out_tile = tb * out_cols * out_item
    w_bytes = (D * h_pad * w_item            # w1
               + h_pad * out_cols * w_item   # w2
               + (h_pad + out_cols) * 4)     # b1, b2 (f32)
    interm = tb * h_pad * 4 + tb * out_cols * 4   # f32 h and z intermediates
    # 2x: default double-buffering on every pipelined operand (weights included).
    return 2 * (x_tile + out_tile + w_bytes) + interm


def _pick_block_rows(B, D, x_item, h_pad, w_item, out_cols, out_item,
                     target_x_bytes=2 << 20, vmem_budget=24 << 20):
    # ~2 MiB of x per tile amortizes the ~0.35 us/grid-step overhead even at
    # small D; clamp to [512, 4096] rows.
    tb = target_x_bytes // max(D * x_item, 1)
    tb = max(512, min(4096, tb))
    # Keep >= 2 (ideally >= 4) batch tiles so both v7x TensorCores get work.
    if B >= 2 * 512:
        cap4 = _round_up(pl.cdiv(B, 4), _SUBLANE)
        cap2 = _round_up(pl.cdiv(B, 2), _SUBLANE)
        tb = min(tb, cap4 if cap4 >= 512 else cap2)
    tb = min(tb, B)
    if tb < B:
        tb = max(_SUBLANE, tb // _SUBLANE * _SUBLANE)
    # Shrink until the tile footprint fits the conservative VMEM budget
    # (v7x: 64 MiB physical; v5e/v6e: 128 MiB).
    while (tb > _SUBLANE and
           _vmem_footprint(tb, D, x_item, h_pad, w_item, out_cols, out_item)
           > vmem_budget):
        tb = max(_SUBLANE, (tb // 2) // _SUBLANE * _SUBLANE)
    return tb


def conver2d_kernel(x_ref, w1_ref, b1_ref, w2_ref, b2_ref, o_ref):
    # One batch tile per grid step; weights/biases are VMEM-resident across steps.
    x = x_ref[...]                                                    # (TB, D)

    # Linear 1 + ReLU (Dropout is identity at inference). MXU, f32 accumulate.
    h = jnp.dot(x, w1_ref[...], preferred_element_type=jnp.float32)  # (TB, Hp)
    h = jnp.maximum(h + b1_ref[...], 0.0)

    # Linear 2 (no activation). Cast h to the weight dtype so a bf16 weight
    # path stays on the bf16 MXU; accumulate in f32 either way.
    z = jnp.dot(h.astype(w2_ref.dtype), w2_ref[...],
                preferred_element_type=jnp.float32)                  # (TB, OC)
    z = z + b2_ref[...]

    # F.normalize(z, dim=-1) == z / max(||z||, 1e-12) == z * rsqrt(max(ssq, 1e-24)).
    # Zero-padded output columns (if any) contribute exactly 0 to the norm.
    ssq = jnp.sum(z * z, axis=-1, keepdims=True)
    o_ref[...] = (z * lax.rsqrt(jnp.maximum(ssq, 1e-24))).astype(o_ref.dtype)


def conver2d_forward(x, w1, b1, w2, b2, *, compute_dtype=jnp.bfloat16,
                     block_rows=None):
    """x: (B, D); w1: (D, H); b1: (1, H); w2: (H, OUT); b2: (1, OUT) -> (B, OUT)."""
    B, D = x.shape
    H = w1.shape[1]
    out_dim = w2.shape[1]
    out_dtype = x.dtype

    # bf16 inputs halve the dominant HBM read (x) and the resident-w1 VMEM; the
    # matmuls accumulate in f32 and the epilogue stays f32 on all generations.
    if compute_dtype is not None:
        x = x.astype(compute_dtype)
        w1 = w1.astype(compute_dtype)
        w2 = w2.astype(compute_dtype)
    b1 = b1.astype(jnp.float32)
    b2 = b2.astype(jnp.float32)

    # Zero-pad hidden 150 -> 256 (exact: relu(0 + 0) = 0 hits zero rows of w2).
    h_pad = _round_up(H, _LANE)
    if h_pad != H:
        w1 = jnp.pad(w1, ((0, 0), (0, h_pad - H)))
        b1 = jnp.pad(b1, ((0, 0), (0, h_pad - H)))
        w2 = jnp.pad(w2, ((0, h_pad - H), (0, 0)))

    # Lane-dense output (pad OUT -> 128 lanes, slice in the wrapper) only when
    # the input row is wide enough that the padded writeback is negligible.
    x_item = jnp.dtype(x.dtype).itemsize
    pad_out = D * x_item >= 4096
    out_cols = _LANE if pad_out else out_dim
    if pad_out:
        w2 = jnp.pad(w2, ((0, 0), (0, out_cols - out_dim)))
        b2 = jnp.pad(b2, ((0, 0), (0, out_cols - out_dim)))

    w_item = jnp.dtype(w1.dtype).itemsize
    out_item = jnp.dtype(out_dtype).itemsize

    tb = block_rows if block_rows is not None else _pick_block_rows(
        B, D, x_item, h_pad, w_item, out_cols, out_item)
    tb = min(tb, B)
    grid = (pl.cdiv(B, tb),)

    footprint = _vmem_footprint(tb, D, x_item, h_pad, w_item, out_cols, out_item)
    vmem_limit = int(min(max(footprint * 3 // 2, 32 << 20), 64 << 20))

    cost = pl.CostEstimate(
        flops=2 * B * D * h_pad + 2 * B * h_pad * out_cols,
        transcendentals=B,  # one rsqrt per row
        bytes_accessed=(B * D * x_item + B * out_cols * out_item
                        + w1.size * w_item + w2.size * w_item
                        + (b1.size + b2.size) * 4),
    )

    out = pl.pallas_call(
        conver2d_kernel,
        out_shape=jax.ShapeDtypeStruct((B, out_cols), out_dtype),
        grid=grid,
        in_specs=[
            pl.BlockSpec((tb, D), lambda i: (i, 0)),            # x: batch-tiled
            pl.BlockSpec((D, h_pad), lambda i: (0, 0)),         # w1: resident
            pl.BlockSpec((1, h_pad), lambda i: (0, 0)),         # b1: resident
            pl.BlockSpec((h_pad, out_cols), lambda i: (0, 0)),  # w2: resident
            pl.BlockSpec((1, out_cols), lambda i: (0, 0)),      # b2: resident
        ],
        out_specs=pl.BlockSpec((tb, out_cols), lambda i: (i, 0)),
        compiler_params=pltpu.CompilerParams(
            dimension_semantics=("parallel",),  # v7x: both TCs share the batch
            vmem_limit_bytes=vmem_limit,
        ),
        cost_estimate=cost,
    )(x, w1, b1, w2, b2)

    return out[:, :out_dim] if pad_out else out


def init_params(key, input_dim, hidden=HIDDEN, out=OUT, dtype=jnp.float32):
    # Xavier-normal with gain = calculate_gain('relu') = sqrt(2), zero biases.
    k1, k2 = jax.random.split(key)
    gain = jnp.sqrt(2.0)
    std1 = gain * jnp.sqrt(2.0 / (input_dim + hidden))
    std2 = gain * jnp.sqrt(2.0 / (hidden + out))
    w1 = (jax.random.normal(k1, (input_dim, hidden)) * std1).astype(dtype)
    w2 = (jax.random.normal(k2, (hidden, out)) * std2).astype(dtype)
    b1 = jnp.zeros((1, hidden), dtype)
    b2 = jnp.zeros((1, out), dtype)
    return w1, b1, w2, b2


if __name__ == "__main__":
    key = jax.random.PRNGKey(0)
    kx, kp = jax.random.split(key)

    # Small but grid-exercising shapes: 1024 rows -> 2 batch tiles of 512.
    B, INPUT_DIM = 1024, 32
    x = jax.random.normal(kx, (B, INPUT_DIM), dtype=jnp.float32)
    w1, b1, w2, b2 = init_params(kp, INPUT_DIM)

    # Pure-JAX f32 reference (PyTorch semantics).
    h_ref = jnp.maximum(x @ w1 + b1, 0.0)
    z_ref = h_ref @ w2 + b2
    ref = z_ref / jnp.maximum(
        jnp.sqrt(jnp.sum(z_ref * z_ref, axis=-1, keepdims=True)), 1e-12)

    # 1) Exact-precision path (compute_dtype=None keeps f32 end to end).
    out_f32 = jax.block_until_ready(
        conver2d_forward(x, w1, b1, w2, b2, compute_dtype=None))
    assert out_f32.shape == (B, OUT)
    assert jnp.allclose(out_f32, ref, atol=1e-5, rtol=1e-5)

    # 2) Default bf16-input path (halved HBM read traffic). Compare against a
    #    reference that applies the same bf16 rounding to inputs/weights/h.
    out_bf16 = jax.block_until_ready(conver2d_forward(x, w1, b1, w2, b2))
    assert out_bf16.shape == (B, OUT)
    xb = x.astype(jnp.bfloat16).astype(jnp.float32)
    w1b = w1.astype(jnp.bfloat16).astype(jnp.float32)
    w2b = w2.astype(jnp.bfloat16).astype(jnp.float32)
    hb = jnp.maximum(xb @ w1b + b1, 0.0).astype(jnp.bfloat16).astype(jnp.float32)
    zb = hb @ w2b + b2
    refb = zb / jnp.maximum(
        jnp.sqrt(jnp.sum(zb * zb, axis=-1, keepdims=True)), 1e-12)
    norms = jnp.sqrt(jnp.sum(out_bf16.astype(jnp.float32) ** 2, axis=-1))
    assert jnp.allclose(norms, 1.0, atol=1e-3)          # normalize invariant
    assert jnp.allclose(out_bf16, refb, atol=5e-3, rtol=1e-2)

    print("KERNEL_OK")
</pallas_src>

<mosaic_0001>
module attributes {stable_mosaic.version = 11 : i64} {
  func.func @conver2d_kernel(%arg0: i32, %arg1: memref<512x32xf32, #tpu.memory_space<vmem>>, %arg2: memref<32x256xf32, #tpu.memory_space<vmem>>, %arg3: memref<1x256xf32, #tpu.memory_space<vmem>>, %arg4: memref<256x2xf32, #tpu.memory_space<vmem>>, %arg5: memref<1x2xf32, #tpu.memory_space<vmem>>, %arg6: memref<512x2xf32, #tpu.memory_space<vmem>>) attributes {dimension_semantics = [#tpu.dimension_semantics<parallel>], iteration_bounds = array<i64: 2>, scalar_prefetch = 0 : i64, scratch_operands = 0 : i64, tpu.core_type = #tpu.core_type<tc>, window_params = [{transform_indices = @transform_0, window_bounds = array<i64: 512, 32>}, {pipeline_mode = #tpu.pipeline_mode<synchronous>, transform_indices = @transform_1, window_bounds = array<i64: 32, 256>}, {pipeline_mode = #tpu.pipeline_mode<synchronous>, transform_indices = @transform_2, window_bounds = array<i64: 1, 256>}, {pipeline_mode = #tpu.pipeline_mode<synchronous>, transform_indices = @transform_3, window_bounds = array<i64: 256, 2>}, {pipeline_mode = #tpu.pipeline_mode<synchronous>, transform_indices = @transform_4, window_bounds = array<i64: 1, 2>}, {transform_indices = @transform_5, window_bounds = array<i64: 512, 2>}]} {
    %c0 = arith.constant 0 : index
    %c0_0 = arith.constant 0 : index
    %0 = vector.load %arg1[%c0, %c0_0] : memref<512x32xf32, #tpu.memory_space<vmem>>, vector<512x32xf32>
    %c0_1 = arith.constant 0 : index
    %c0_2 = arith.constant 0 : index
    %1 = vector.load %arg2[%c0_1, %c0_2] : memref<32x256xf32, #tpu.memory_space<vmem>>, vector<32x256xf32>
    %cst = arith.constant dense<0.000000e+00> : vector<512x256xf32>
    %2 = tpu.matmul %0, %1, %cst {dimension_numbers = #tpu.dot_dimension_numbers<[1], [0], [0], [1], [0, 0, 1, 1], [], []>} : vector<512x32xf32>, vector<32x256xf32>, vector<512x256xf32> -> vector<512x256xf32>
    %c0_3 = arith.constant 0 : index
    %c0_4 = arith.constant 0 : index
    %3 = vector.load %arg3[%c0_3, %c0_4] : memref<1x256xf32, #tpu.memory_space<vmem>>, vector<1x256xf32>
    %4 = vector.broadcast %3 : vector<1x256xf32> to vector<512x256xf32>
    %5 = arith.addf %2, %4 : vector<512x256xf32>
    %cst_5 = arith.constant 0.000000e+00 : f32
    %6 = vector.broadcast %cst_5 : f32 to vector<512x256xf32>
    %7 = arith.maximumf %5, %6 : vector<512x256xf32>
    %c0_6 = arith.constant 0 : index
    %c0_7 = arith.constant 0 : index
    %8 = vector.load %arg4[%c0_6, %c0_7] : memref<256x2xf32, #tpu.memory_space<vmem>>, vector<256x2xf32>
    %cst_8 = arith.constant dense<0.000000e+00> : vector<512x2xf32>
    %9 = tpu.matmul %7, %8, %cst_8 {dimension_numbers = #tpu.dot_dimension_numbers<[1], [0], [0], [1], [0, 0, 1, 1], [], []>} : vector<512x256xf32>, vector<256x2xf32>, vector<512x2xf32> -> vector<512x2xf32>
    %c0_9 = arith.constant 0 : index
    %c0_10 = arith.constant 0 : index
    %10 = vector.load %arg5[%c0_9, %c0_10] : memref<1x2xf32, #tpu.memory_space<vmem>>, vector<1x2xf32>
    %11 = vector.broadcast %10 : vector<1x2xf32> to vector<512x2xf32>
    %12 = arith.addf %9, %11 : vector<512x2xf32>
    %13 = arith.mulf %12, %12 : vector<512x2xf32>
    %cst_11 = arith.constant dense<0.000000e+00> : vector<512xf32>
    %14 = vector.multi_reduction <add>, %13, %cst_11 [1] : vector<512x2xf32> to vector<512xf32>
    %15 = vector.shape_cast %14 : vector<512xf32> to vector<512x1xf32>
    %cst_12 = arith.constant 1.000000e-24 : f32
    %16 = vector.broadcast %cst_12 : f32 to vector<512x1xf32>
    %17 = arith.maximumf %15, %16 : vector<512x1xf32>
    %18 = math.rsqrt %17 : vector<512x1xf32>
    %19 = vector.broadcast %18 : vector<512x1xf32> to vector<512x2xf32>
    %20 = arith.mulf %12, %19 : vector<512x2xf32>
    %c0_13 = arith.constant 0 : index
    %c0_14 = arith.constant 0 : index
    %21 = vector.load %arg6[%c0_13, %c0_14] : memref<512x2xf32, #tpu.memory_space<vmem>>, vector<512x2xf32>
    tpu.vector_store %arg6[%c0_13, %c0_14], %20 {strides = array<i32>} : memref<512x2xf32, #tpu.memory_space<vmem>>, vector<512x2xf32>,
    return
  }
  func.func @transform_0(%arg0: i32) -> (i32, i32) {
    %c0_i32 = arith.constant 0 : i32
    %c0_i32_0 = arith.constant 0 : i32
    return %arg0, %c0_i32 : i32, i32
  }
  func.func @transform_1(%arg0: i32) -> (i32, i32) {
    %c0_i32 = arith.constant 0 : i32
    %c0_i32_0 = arith.constant 0 : i32
    %c0_i32_1 = arith.constant 0 : i32
    return %c0_i32, %c0_i32_0 : i32, i32
  }
  func.func @transform_2(%arg0: i32) -> (i32, i32) {
    %c0_i32 = arith.constant 0 : i32
    %c0_i32_0 = arith.constant 0 : i32
    %c0_i32_1 = arith.constant 0 : i32
    return %c0_i32, %c0_i32_0 : i32, i32
  }
  func.func @transform_3(%arg0: i32) -> (i32, i32) {
    %c0_i32 = arith.constant 0 : i32
    %c0_i32_0 = arith.constant 0 : i32
    %c0_i32_1 = arith.constant 0 : i32
    return %c0_i32, %c0_i32_0 : i32, i32
  }
  func.func @transform_4(%arg0: i32) -> (i32, i32) {
    %c0_i32 = arith.constant 0 : i32
    %c0_i32_0 = arith.constant 0 : i32
    %c0_i32_1 = arith.constant 0 : i32
    return %c0_i32, %c0_i32_0 : i32, i32
  }
  func.func @transform_5(%arg0: i32) -> (i32, i32) {
    %c0_i32 = arith.constant 0 : i32
    %c0_i32_0 = arith.constant 0 : i32
    return %arg0, %c0_i32 : i32, i32
  }
}

</mosaic_0001>

<llo_original>
// kernel: tpu_custom_call.1
$region0: #{tpu_custom_call.1}
  #allocation0 [shape = 'u32[]', space=smem, size = 0x4, offset = 0x4, fixed_abs, tag = 'smem constant byte address 0x4 - core index']
  #allocation1 [shape = 'u32[72,128]{1,0:T(1,128)}', space=vmem, size = 0x9000, scoped, tag = 'internal scratch']
  %s0 = inlined_call_operand.vmem [shape: f32[1024,32], index: 0, kind: input, shape index: {}]
  %s1 = inlined_call_operand.vmem [shape: f32[32,256], index: 1, kind: input, shape index: {}]
  %s2 = inlined_call_operand.vmem [shape: f32[1,256], index: 2, kind: input, shape index: {}]
  %s3 = inlined_call_operand.vmem [shape: f32[256,2], index: 3, kind: input, shape index: {}]
  %s4 = inlined_call_operand.vmem [shape: f32[1,2], index: 4, kind: input, shape index: {}]
  %s5 = inlined_call_operand.vmem [shape: f32[1024,2], index: 5, kind: output, shape index: {}]
  %s6 = sld [smem:[#allocation0]]
  $region53: #{tpu_custom_call.1} parent=0
    _
  %s8 = ssub.s32 1, %s6
  %s9 = scalar_select 0, %s8, %s6
  loop: start=0, step=1, limit=4
  $region2: #{tpu_custom_call.1} parent=0 // loop_pre_header
    _
  $region3: #{tpu_custom_call.1} parent=0 // loop_header
    %s11 = sphi 0, %s15
    %p12 = scmp.ge.s32.totalorder %s11, 4
    %s21 = sphi 0, %s23
    %s24 = sphi 0, %s21
    %s25 = sphi 0, %s24
    %s41 = sphi 0, %s25
    %s45 = sphi 0, %s45
    %s47 = sphi 0, %s45
    %s48 = sphi 0, %s47
    %s62 = sphi 0, %s48
    %s66 = sphi 0, %s66
    %s68 = sphi 0, %s66
    %s69 = sphi 0, %s68
    %s83 = sphi 0, %s69
    %s87 = sphi 0, %s87
    %s89 = sphi 0, %s87
    %s90 = sphi 0, %s89
    %s104 = sphi 0, %s90
    %s108 = sphi 0, %s108
    %s110 = sphi 0, %s108
    %s111 = sphi 0, %s110
    %s125 = sphi 0, %s111
    %s131 = sphi 0, %s133
    %s134 = sphi 0, %s131
    %s135 = sphi 0, %s134
    %s151 = sphi 0, %s135
  $region4: #{tpu_custom_call.1} parent=0 // loop_header_branch
    %14 = sbr.rel (%p12) target = $region8
  $region5: #{tpu_custom_call.1} parent=0 // loop_body
    %s16 = ssub.s32 %s11, 1
    %s17 = ssub.s32 %s11, 2
    %s18 = sadd.s32 %s11, 1
    %s19 = ssub.s32 %s11, %s18
    %p20 = scmp.eq.s32.totalorder %s19, 0
    %s22 = sadd.s32 %s21, 1
    %s23 = scalar_select %p20, %s21, %s22
    %p26 = pneg %p20
    %p27 = scmp.eq.s32.totalorder %s11, 1
    %p28 = por %p26, %p27
    %p29 = scmp.ne.s32.totalorder %s21, %s24
    %p30 = scmp.eq.s32.totalorder %s11, 0
    %p31 = por %p29, %p30
    %p32 = scmp.ne.s32.totalorder %s21, %s24
    %p33 = scmp.eq.s32.totalorder %s16, 1
    %p34 = por %p32, %p33
    %p35 = scmp.ne.s32.totalorder %s24, %s25
    %p36 = scmp.eq.s32.totalorder %s16, 0
    %p37 = por %p35, %p36
    %p38 = scmp.ne.s32.totalorder %s24, %s25
    %p39 = scmp.eq.s32.totalorder %s17, 1
    %p40 = por %p38, %p39
    %p42 = scmp.ne.s32.totalorder %s25, %s41
    %p43 = scmp.eq.s32.totalorder %s17, 0
    %p44 = por %p42, %p43
    %s46 = sadd.s32 %s45, 1
    %p49 = scmp.eq.s32.totalorder %s11, 1
    %p50 = scmp.ne.s32.totalorder %s45, %s47
    %p51 = scmp.eq.s32.totalorder %s11, 0
    %p52 = por %p50, %p51
    %p53 = scmp.ne.s32.totalorder %s45, %s47
    %p54 = scmp.eq.s32.totalorder %s16, 1
    %p55 = por %p53, %p54
    %p56 = scmp.ne.s32.totalorder %s47, %s48
    %p57 = scmp.eq.s32.totalorder %s16, 0
    %p58 = por %p56, %p57
    %p59 = scmp.ne.s32.totalorder %s47, %s48
    %p60 = scmp.eq.s32.totalorder %s17, 1
    %p61 = por %p59, %p60
    %p63 = scmp.ne.s32.totalorder %s48, %s62
    %p64 = scmp.eq.s32.totalorder %s17, 0
    %p65 = por %p63, %p64
    %s67 = sadd.s32 %s66, 1
    %p70 = scmp.eq.s32.totalorder %s11, 1
    %p71 = scmp.ne.s32.totalorder %s66, %s68
    %p72 = scmp.eq.s32.totalorder %s11, 0
    %p73 = por %p71, %p72
    %p74 = scmp.ne.s32.totalorder %s66, %s68
    %p75 = scmp.eq.s32.totalorder %s16, 1
    %p76 = por %p74, %p75
    %p77 = scmp.ne.s32.totalorder %s68, %s69
    %p78 = scmp.eq.s32.totalorder %s16, 0
    %p79 = por %p77, %p78
    %p80 = scmp.ne.s32.totalorder %s68, %s69
    %p81 = scmp.eq.s32.totalorder %s17, 1
    %p82 = por %p80, %p81
    %p84 = scmp.ne.s32.totalorder %s69, %s83
    %p85 = scmp.eq.s32.totalorder %s17, 0
    %p86 = por %p84, %p85
    %s88 = sadd.s32 %s87, 1
    %p91 = scmp.eq.s32.totalorder %s11, 1
    %p92 = scmp.ne.s32.totalorder %s87, %s89
    %p93 = scmp.eq.s32.totalorder %s11, 0
    %p94 = por %p92, %p93
    %p95 = scmp.ne.s32.totalorder %s87, %s89
    %p96 = scmp.eq.s32.totalorder %s16, 1
    %p97 = por %p95, %p96
    %p98 = scmp.ne.s32.totalorder %s89, %s90
    %p99 = scmp.eq.s32.totalorder %s16, 0
    %p100 = por %p98, %p99
    %p101 = scmp.ne.s32.totalorder %s89, %s90
    %p102 = scmp.eq.s32.totalorder %s17, 1
    %p103 = por %p101, %p102
    %p105 = scmp.ne.s32.totalorder %s90, %s104
    %p106 = scmp.eq.s32.totalorder %s17, 0
    %p107 = por %p105, %p106
    %s109 = sadd.s32 %s108, 1
    %p112 = scmp.eq.s32.totalorder %s11, 1
    %p113 = scmp.ne.s32.totalorder %s108, %s110
    %p114 = scmp.eq.s32.totalorder %s11, 0
    %p115 = por %p113, %p114
    %p116 = scmp.ne.s32.totalorder %s108, %s110
    %p117 = scmp.eq.s32.totalorder %s16, 1
    %p118 = por %p116, %p117
    %p119 = scmp.ne.s32.totalorder %s110, %s111
    %p120 = scmp.eq.s32.totalorder %s16, 0
    %p121 = por %p119, %p120
    %p122 = scmp.ne.s32.totalorder %s110, %s111
    %p123 = scmp.eq.s32.totalorder %s17, 1
    %p124 = por %p122, %p123
    %p126 = scmp.ne.s32.totalorder %s111, %s125
    %p127 = scmp.eq.s32.totalorder %s17, 0
    %p128 = por %p126, %p127
    %s129 = ssub.s32 %s11, %s18
    %p130 = scmp.eq.s32.totalorder %s129, 0
    %s132 = sadd.s32 %s131, 1
    %s133 = scalar_select %p130, %s131, %s132
    %p136 = pneg %p130
    %p137 = scmp.eq.s32.totalorder %s11, 1
    %p138 = por %p136, %p137
    %p139 = scmp.ne.s32.totalorder %s131, %s134
    %p140 = scmp.eq.s32.totalorder %s11, 0
    %p141 = por %p139, %p140
    %p142 = scmp.ne.s32.totalorder %s131, %s134
    %p143 = scmp.eq.s32.totalorder %s16, 1
    %p144 = por %p142, %p143
    %p145 = scmp.ne.s32.totalorder %s134, %s135
    %p146 = scmp.eq.s32.totalorder %s16, 0
    %p147 = por %p145, %p146
    %p148 = scmp.ne.s32.totalorder %s134, %s135
    %p149 = scmp.eq.s32.totalorder %s17, 1
    %p150 = por %p148, %p149
    %p152 = scmp.ne.s32.totalorder %s135, %s151
    %p153 = scmp.eq.s32.totalorder %s17, 0
    %p154 = por %p152, %p153
    %p155 = scmp.le.s32.totalorder 1, %s11
    %p156 = scmp.lt.s32.totalorder %s11, 3
    %p157 = pnand %p155, %p156
    %p158 = pneg %p157
    // Predicated region
    $region9: #{tpu_custom_call.1} parent=5 // pred_check
      _
    $region10: #{tpu_custom_call.1} parent=5 // pred_check_branch
      %160 = sbr.rel (%p157) target = $region12
    $region11: #{tpu_custom_call.1} parent=5 // pred_region
      %s161 = ssub.s32 %s11, 1
      // Predicated region
      $region13: #{tpu_custom_call.1} parent=11 // pred_check
        %p162 = pneg %p58
      $region14: #{tpu_custom_call.1} parent=11 // pred_check_branch
        %164 = sbr.rel (%p162) target = $region16
      $region15: #{tpu_custom_call.1} parent=11 // pred_region
        _
      $region16: #{tpu_custom_call.1} parent=11 // pred_fallthru
        _
      // Predicated region
      $region17: #{tpu_custom_call.1} parent=11 // pred_check
        %p165 = pneg %p79
      $region18: #{tpu_custom_call.1} parent=11 // pred_check_branch
        %167 = sbr.rel (%p165) target = $region20
      $region19: #{tpu_custom_call.1} parent=11 // pred_region
        _
      $region20: #{tpu_custom_call.1} parent=11 // pred_fallthru
        _
      // Predicated region
      $region21: #{tpu_custom_call.1} parent=11 // pred_check
        %p168 = pneg %p100
      $region22: #{tpu_custom_call.1} parent=11 // pred_check_branch
        %170 = sbr.rel (%p168) target = $region24
      $region23: #{tpu_custom_call.1} parent=11 // pred_region
        _
      $region24: #{tpu_custom_call.1} parent=11 // pred_fallthru
        _
      // Predicated region
      $region25: #{tpu_custom_call.1} parent=11 // pred_check
        %p171 = pneg %p121
      $region26: #{tpu_custom_call.1} parent=11 // pred_check_branch
        %173 = sbr.rel (%p171) target = $region28
      $region27: #{tpu_custom_call.1} parent=11 // pred_region
        _
      $region28: #{tpu_custom_call.1} parent=11 // pred_fallthru
        _
    $region12: #{tpu_custom_call.1} parent=5 // pred_fallthru
      _
    %p174 = scmp.lt.s32.totalorder %s11, 2
    // Predicated region
    $region29: #{tpu_custom_call.1} parent=5 // pred_check
      %p175 = pneg %p174
    $region30: #{tpu_custom_call.1} parent=5 // pred_check_branch
      %177 = sbr.rel (%p175) target = $region32
    $region31: #{tpu_custom_call.1} parent=5 // pred_region
      // Predicated region
      $region33: #{tpu_custom_call.1} parent=31 // pred_check
        %p178 = pneg %p31
      $region34: #{tpu_custom_call.1} parent=31 // pred_check_branch
        %180 = sbr.rel (%p178) target = $region36
      $region35: #{tpu_custom_call.1} parent=31 // pred_region
        %s181 = smul.u32 64, %s11
        %p182 = scmp.lt.s32.totalorder %s181, 127
        %s183 = scalar_select %p182, %s181, 127
        %s184 = smul.addr %s183, 8
        %s185 = scalar_lea.vmem %s0, %s184
        %s186 = smul.u32 64, %s11
      $region36: #{tpu_custom_call.1} parent=31 // pred_fallthru
        _
    $region32: #{tpu_custom_call.1} parent=5 // pred_fallthru
      _
    %p187 = scmp.le.s32.totalorder 1, %s11
    %p188 = scmp.lt.s32.totalorder %s11, 3
    %p189 = pnand %p187, %p188
    %p190 = pneg %p189
    // Predicated region
    $region37: #{tpu_custom_call.1} parent=5 // pred_check
      _
    $region38: #{tpu_custom_call.1} parent=5 // pred_check_branch
      %192 = sbr.rel (%p189) target = $region40
    $region39: #{tpu_custom_call.1} parent=5 // pred_region
      %s193 = ssub.s32 %s11, 1
      %s194 = smul.u32 64, %s16
      %p195 = scmp.lt.s32.totalorder %s194, 127
      %s196 = scalar_select %p195, %s194, 127
      %s197 = smul.addr %s196, 8
      %s198 = scalar_lea.vmem %s0, %s197
      %p199 = pneg %p37
      %p200 = pneg %p34
      %p201 = pneg %p58
      %p202 = pneg %p55
      %p203 = pneg %p79
      %p204 = pneg %p76
      %p205 = pneg %p100
      %p206 = pneg %p97
      %p207 = pneg %p121
      %p208 = pneg %p118
      %p209 = pneg %p147
      %p210 = pneg %p144
      %s211 = smul.u32 64, %s16
      %p212 = scmp.lt.s32.totalorder %s211, 127
      %s213 = scalar_select %p212, %s211, 127
      %s214 = smul.addr %s213, 8
      %s215 = scalar_lea.vmem %s5, %s214
      %s216 = smul.u32 64, %s16
      %p217 = scmp.lt.s32.totalorder %s216, 127
      %s218 = scalar_select %p217, %s216, 127
      %s219 = smul.addr %s218, 8
      %s220 = scalar_lea.vmem %s0, %s219
      %s221 = smul.u32 64, %s16
      %s222 = smul.u32 64, %s16
      %p223 = scmp.lt.s32.totalorder %s222, 127
      %s224 = scalar_select %p223, %s222, 127
      %s225 = smul.addr %s224, 8
      %s226 = scalar_lea.vmem %s5, %s225
      %s227 = smul.u32 64, %s16
      %v228 = vld [vmem:[%s220] sm:$0xff]
      %v229 = vld [vmem:[%s220 + $0x8] sm:$0xff]
      %v230 = vld [vmem:[%s220 + $0x10] sm:$0xff]
      %v231 = vld [vmem:[%s220 + $0x18] sm:$0xff]
      %v232 = vld [vmem:[%s220 + $0x20] sm:$0xff]
      %v233 = vld [vmem:[%s220 + $0x28] sm:$0xff]
      %v234 = vld [vmem:[%s220 + $0x30] sm:$0xff]
      %v235 = vld [vmem:[%s220 + $0x38] sm:$0xff]
      %v236 = vld [vmem:[%s220 + $0x40] sm:$0xff]
      %v237 = vld [vmem:[%s220 + $0x48] sm:$0xff]
      %v238 = vld [vmem:[%s220 + $0x50] sm:$0xff]
      %v239 = vld [vmem:[%s220 + $0x58] sm:$0xff]
      %v240 = vld [vmem:[%s220 + $0x60] sm:$0xff]
      %v241 = vld [vmem:[%s220 + $0x68] sm:$0xff]
      %v242 = vld [vmem:[%s220 + $0x70] sm:$0xff]
      %v243 = vld [vmem:[%s220 + $0x78] sm:$0xff]
      %v244 = vld [vmem:[%s220 + $0x80] sm:$0xff]
      %v245 = vld [vmem:[%s220 + $0x88] sm:$0xff]
      %v246 = vld [vmem:[%s220 + $0x90] sm:$0xff]
      %v247 = vld [vmem:[%s220 + $0x98] sm:$0xff]
      %v248 = vld [vmem:[%s220 + $0xa0] sm:$0xff]
      %v249 = vld [vmem:[%s220 + $0xa8] sm:$0xff]
      %v250 = vld [vmem:[%s220 + $0xb0] sm:$0xff]
      %v251 = vld [vmem:[%s220 + $0xb8] sm:$0xff]
      %v252 = vld [vmem:[%s220 + $0xc0] sm:$0xff]
      %v253 = vld [vmem:[%s220 + $0xc8] sm:$0xff]
      %v254 = vld [vmem:[%s220 + $0xd0] sm:$0xff]
      %v255 = vld [vmem:[%s220 + $0xd8] sm:$0xff]
      %v256 = vld [vmem:[%s220 + $0xe0] sm:$0xff]
      %v257 = vld [vmem:[%s220 + $0xe8] sm:$0xff]
      %v258 = vld [vmem:[%s220 + $0xf0] sm:$0xff]
      %v259 = vld [vmem:[%s220 + $0xf8] sm:$0xff]
      %v260 = vld [vmem:[%s220 + $0x100] sm:$0xff]
      %v261 = vld [vmem:[%s220 + $0x108] sm:$0xff]
      %v262 = vld [vmem:[%s220 + $0x110] sm:$0xff]
      %v263 = vld [vmem:[%s220 + $0x118] sm:$0xff]
      %v264 = vld [vmem:[%s220 + $0x120] sm:$0xff]
      %v265 = vld [vmem:[%s220 + $0x128] sm:$0xff]
      %v266 = vld [vmem:[%s220 + $0x130] sm:$0xff]
      %v267 = vld [vmem:[%s220 + $0x138] sm:$0xff]
      %v268 = vld [vmem:[%s220 + $0x140] sm:$0xff]
      %v269 = vld [vmem:[%s220 + $0x148] sm:$0xff]
      %v270 = vld [vmem:[%s220 + $0x150] sm:$0xff]
      %v271 = vld [vmem:[%s220 + $0x158] sm:$0xff]
      %v272 = vld [vmem:[%s220 + $0x160] sm:$0xff]
      %v273 = vld [vmem:[%s220 + $0x168] sm:$0xff]
      %v274 = vld [vmem:[%s220 + $0x170] sm:$0xff]
      %v275 = vld [vmem:[%s220 + $0x178] sm:$0xff]
      %v276 = vld [vmem:[%s220 + $0x180] sm:$0xff]
      %v277 = vld [vmem:[%s220 + $0x188] sm:$0xff]
      %v278 = vld [vmem:[%s220 + $0x190] sm:$0xff]
      %v279 = vld [vmem:[%s220 + $0x198] sm:$0xff]
      %v280 = vld [vmem:[%s220 + $0x1a0] sm:$0xff]
      %v281 = vld [vmem:[%s220 + $0x1a8] sm:$0xff]
      %v282 = vld [vmem:[%s220 + $0x1b0] sm:$0xff]
      %v283 = vld [vmem:[%s220 + $0x1b8] sm:$0xff]
      %v284 = vld [vmem:[%s220 + $0x1c0] sm:$0xff]
      %v285 = vld [vmem:[%s220 + $0x1c8] sm:$0xff]
      %v286 = vld [vmem:[%s220 + $0x1d0] sm:$0xff]
      %v287 = vld [vmem:[%s220 + $0x1d8] sm:$0xff]
      %v288 = vld [vmem:[%s220 + $0x1e0] sm:$0xff]
      %v289 = vld [vmem:[%s220 + $0x1e8] sm:$0xff]
      %v290 = vld [vmem:[%s220 + $0x1f0] sm:$0xff]
      %v291 = vld [vmem:[%s220 + $0x1f8] sm:$0xff]
      %v292 = vld [vmem:[%s1] sm:$0xff]
      %v293 = vld [vmem:[%s1 + $0x8] sm:$0xff]
      %v294 = vld [vmem:[%s1 + $0x10] sm:$0xff]
      %v295 = vld [vmem:[%s1 + $0x18] sm:$0xff]
      %v296 = vld [vmem:[%s1 + $0x20] sm:$0xff]
      %v297 = vld [vmem:[%s1 + $0x28] sm:$0xff]
      %v298 = vld [vmem:[%s1 + $0x30] sm:$0xff]
      %v299 = vld [vmem:[%s1 + $0x38] sm:$0xff]
      %v300 = vld [vmem:[%s2] sm:$0x3]
      %v302 = vperm.slane %v300, 0
      %v303 = vperm.slane %v300, 1
      %vm306 = vcmask 261120
      %v308 = vsel %vm306, %v228, 0
      %v311 = vsel %vm306, %v229, 0
      %v314 = vsel %vm306, %v230, 0
      %v317 = vsel %vm306, %v231, 0
      %v320 = vsel %vm306, %v232, 0
      %v323 = vsel %vm306, %v233, 0
      %v326 = vsel %vm306, %v234, 0
      %v329 = vsel %vm306, %v235, 0
      %v332 = vsel %vm306, %v236, 0
      %v335 = vsel %vm306, %v237, 0
      %v338 = vsel %vm306, %v238, 0
      %v341 = vsel %vm306, %v239, 0
      %v344 = vsel %vm306, %v240, 0
      %v347 = vsel %vm306, %v241, 0
      %v350 = vsel %vm306, %v242, 0
      %v353 = vsel %vm306, %v243, 0
      %v356 = vsel %vm306, %v244, 0
      %v359 = vsel %vm306, %v245, 0
      %v362 = vsel %vm306, %v246, 0
      %v365 = vsel %vm306, %v247, 0
      %v368 = vsel %vm306, %v248, 0
      %v371 = vsel %vm306, %v249, 0
      %v374 = vsel %vm306, %v250, 0
      %v377 = vsel %vm306, %v251, 0
      %v380 = vsel %vm306, %v252, 0
      %v383 = vsel %vm306, %v253, 0
      %v386 = vsel %vm306, %v254, 0
      %v389 = vsel %vm306, %v255, 0
      %v392 = vsel %vm306, %v256, 0
      %v395 = vsel %vm306, %v257, 0
      %v398 = vsel %vm306, %v258, 0
      %v401 = vsel %vm306, %v259, 0
      %v404 = vsel %vm306, %v260, 0
      %v407 = vsel %vm306, %v261, 0
      %v410 = vsel %vm306, %v262, 0
      %v413 = vsel %vm306, %v263, 0
      %v416 = vsel %vm306, %v264, 0
      %v419 = vsel %vm306, %v265, 0
      %v422 = vsel %vm306, %v266, 0
      %v425 = vsel %vm306, %v267, 0
      %v428 = vsel %vm306, %v268, 0
      %v431 = vsel %vm306, %v269, 0
      %v434 = vsel %vm306, %v270, 0
      %v437 = vsel %vm306, %v271, 0
      %v440 = vsel %vm306, %v272, 0
      %v443 = vsel %vm306, %v273, 0
      %v446 = vsel %vm306, %v274, 0
      %v449 = vsel %vm306, %v275, 0
      %v452 = vsel %vm306, %v276, 0
      %v455 = vsel %vm306, %v277, 0
      %v458 = vsel %vm306, %v278, 0
      %v461 = vsel %vm306, %v279, 0
      %v464 = vsel %vm306, %v280, 0
      %v467 = vsel %vm306, %v281, 0
      %v470 = vsel %vm306, %v282, 0
      %v473 = vsel %vm306, %v283, 0
      %v476 = vsel %vm306, %v284, 0
      %v479 = vsel %vm306, %v285, 0
      %v482 = vsel %vm306, %v286, 0
      %v485 = vsel %vm306, %v287, 0
      %v488 = vsel %vm306, %v288, 0
      %v491 = vsel %vm306, %v289, 0
      %v494 = vsel %vm306, %v290, 0
      %v497 = vsel %vm306, %v291, 0
      %499 = vmatpush.msra.mxu0 0.0
      %500 = vmatpush.msra.mxu0 0.0
      %501 = vmatpush.msra.mxu0 0.0
      %502 = vmatpush.msra.mxu0 0.0
      %503 = vmatpush.msra.mxu0 0.0
      %504 = vmatpush.msra.mxu0 0.0
      %505 = vmatpush.msra.mxu0 0.0
      %506 = vmatpush.msra.mxu0 0.0
      %507 = vmatpush.msra.mxu0 0.0
      %508 = vmatpush.msra.mxu0 0.0
      %509 = vmatpush.msra.mxu0 0.0
      %510 = vmatpush.msra.mxu0 0.0
      %511 = vmatpush.msra.mxu0 %v298
      %512 = vmatpush.msra.mxu0 %v296
      %513 = vmatpush.msra.mxu0 %v294
      %514 = vmatpush.msra.mxu0 %v292
      %515 = vmatmul.f32.gmra.mxu0 %v308
      %v516 = vpop.f32.mrf.mxu0
      %v517 = vadd.f32 %v302, %v516
      %518 = vmatmul.f32.gmra.mxu0 %v311
      %v519 = vpop.f32.mrf.mxu0
      %v520 = vadd.f32 %v302, %v519
      %521 = vmatmul.f32.gmra.mxu0 %v314
      %v522 = vpop.f32.mrf.mxu0
      %v523 = vadd.f32 %v302, %v522
      %524 = vmatmul.f32.gmra.mxu0 %v317
      %v525 = vpop.f32.mrf.mxu0
      %v526 = vadd.f32 %v302, %v525
      %527 = vmatmul.f32.gmra.mxu0 %v320
      %v528 = vpop.f32.mrf.mxu0
      %v529 = vadd.f32 %v302, %v528
      %530 = vmatmul.f32.gmra.mxu0 %v323
      %v531 = vpop.f32.mrf.mxu0
      %v532 = vadd.f32 %v302, %v531
      %533 = vmatmul.f32.gmra.mxu0 %v326
      %v534 = vpop.f32.mrf.mxu0
      %v535 = vadd.f32 %v302, %v534
      %536 = vmatmul.f32.gmra.mxu0 %v329
      %v537 = vpop.f32.mrf.mxu0
      %v538 = vadd.f32 %v302, %v537
      %539 = vmatmul.f32.gmra.mxu0 %v332
      %v540 = vpop.f32.mrf.mxu0
      %v541 = vadd.f32 %v302, %v540
      %542 = vmatmul.f32.gmra.mxu0 %v335
      %v543 = vpop.f32.mrf.mxu0
      %v544 = vadd.f32 %v302, %v543
      %545 = vmatmul.f32.gmra.mxu0 %v338
      %v546 = vpop.f32.mrf.mxu0
      %v547 = vadd.f32 %v302, %v546
      %548 = vmatmul.f32.gmra.mxu0 %v341
      %v549 = vpop.f32.mrf.mxu0
      %v550 = vadd.f32 %v302, %v549
      %551 = vmatmul.f32.gmra.mxu0 %v344
      %v552 = vpop.f32.mrf.mxu0
      %v553 = vadd.f32 %v302, %v552
      %554 = vmatmul.f32.gmra.mxu0 %v347
      %v555 = vpop.f32.mrf.mxu0
      %v556 = vadd.f32 %v302, %v555
      %557 = vmatmul.f32.gmra.mxu0 %v350
      %v558 = vpop.f32.mrf.mxu0
      %v559 = vadd.f32 %v302, %v558
      %560 = vmatmul.f32.gmra.mxu0 %v353
      %v561 = vpop.f32.mrf.mxu0
      %v562 = vadd.f32 %v302, %v561
      %563 = vmatmul.f32.gmra.mxu0 %v356
      %v564 = vpop.f32.mrf.mxu0
      %v565 = vadd.f32 %v302, %v564
      %566 = vmatmul.f32.gmra.mxu0 %v359
      %v567 = vpop.f32.mrf.mxu0
      %v568 = vadd.f32 %v302, %v567
      %569 = vmatmul.f32.gmra.mxu0 %v362
      %v570 = vpop.f32.mrf.mxu0
      %v571 = vadd.f32 %v302, %v570
      %572 = vmatmul.f32.gmra.mxu0 %v365
      %v573 = vpop.f32.mrf.mxu0
      %v574 = vadd.f32 %v302, %v573
      %575 = vmatmul.f32.gmra.mxu0 %v368
      %v576 = vpop.f32.mrf.mxu0
      %v577 = vadd.f32 %v302, %v576
      %578 = vmatmul.f32.gmra.mxu0 %v371
      %v579 = vpop.f32.mrf.mxu0
      %v580 = vadd.f32 %v302, %v579
      %581 = vmatmul.f32.gmra.mxu0 %v374
      %v582 = vpop.f32.mrf.mxu0
      %v583 = vadd.f32 %v302, %v582
      %584 = vmatmul.f32.gmra.mxu0 %v377
      %v585 = vpop.f32.mrf.mxu0
      %v586 = vadd.f32 %v302, %v585
      %587 = vmatmul.f32.gmra.mxu0 %v380
      %v588 = vpop.f32.mrf.mxu0
      %v589 = vadd.f32 %v302, %v588
      %590 = vmatmul.f32.gmra.mxu0 %v383
      %v591 = vpop.f32.mrf.mxu0
      %v592 = vadd.f32 %v302, %v591
      %593 = vmatmul.f32.gmra.mxu0 %v386
      %v594 = vpop.f32.mrf.mxu0
      %v595 = vadd.f32 %v302, %v594
      %596 = vmatmul.f32.gmra.mxu0 %v389
      %v597 = vpop.f32.mrf.mxu0
      %v598 = vadd.f32 %v302, %v597
      %599 = vmatmul.f32.gmra.mxu0 %v392
      %v600 = vpop.f32.mrf.mxu0
      %v601 = vadd.f32 %v302, %v600
      %602 = vmatmul.f32.gmra.mxu0 %v395
      %v603 = vpop.f32.mrf.mxu0
      %v604 = vadd.f32 %v302, %v603
      %605 = vmatmul.f32.gmra.mxu0 %v398
      %v606 = vpop.f32.mrf.mxu0
      %v607 = vadd.f32 %v302, %v606
      %608 = vmatmul.f32.gmra.mxu0 %v401
      %v609 = vpop.f32.mrf.mxu0
      %v610 = vadd.f32 %v302, %v609
      %611 = vmatmul.f32.gmra.mxu0 %v404
      %v612 = vpop.f32.mrf.mxu0
      %v613 = vadd.f32 %v302, %v612
      %614 = vmatmul.f32.gmra.mxu0 %v407
      %v615 = vpop.f32.mrf.mxu0
      %v616 = vadd.f32 %v302, %v615
      %617 = vmatmul.f32.gmra.mxu0 %v410
      %v618 = vpop.f32.mrf.mxu0
      %v619 = vadd.f32 %v302, %v618
      %620 = vmatmul.f32.gmra.mxu0 %v413
      %v621 = vpop.f32.mrf.mxu0
      %v622 = vadd.f32 %v302, %v621
      %623 = vmatmul.f32.gmra.mxu0 %v416
      %v624 = vpop.f32.mrf.mxu0
      %v625 = vadd.f32 %v302, %v624
      %626 = vmatmul.f32.gmra.mxu0 %v419
      %v627 = vpop.f32.mrf.mxu0
      %v628 = vadd.f32 %v302, %v627
      %629 = vmatmul.f32.gmra.mxu0 %v422
      %v630 = vpop.f32.mrf.mxu0
      %v631 = vadd.f32 %v302, %v630
      %632 = vmatmul.f32.gmra.mxu0 %v425
      %v633 = vpop.f32.mrf.mxu0
      %v634 = vadd.f32 %v302, %v633
      %635 = vmatmul.f32.gmra.mxu0 %v428
      %v636 = vpop.f32.mrf.mxu0
      %v637 = vadd.f32 %v302, %v636
      %638 = vmatmul.f32.gmra.mxu0 %v431
      %v639 = vpop.f32.mrf.mxu0
      %v640 = vadd.f32 %v302, %v639
      %641 = vmatmul.f32.gmra.mxu0 %v434
      %v642 = vpop.f32.mrf.mxu0
      %v643 = vadd.f32 %v302, %v642
      %644 = vmatmul.f32.gmra.mxu0 %v437
      %v645 = vpop.f32.mrf.mxu0
      %v646 = vadd.f32 %v302, %v645
      %647 = vmatmul.f32.gmra.mxu0 %v440
      %v648 = vpop.f32.mrf.mxu0
      %v649 = vadd.f32 %v302, %v648
      %650 = vmatmul.f32.gmra.mxu0 %v443
      %v651 = vpop.f32.mrf.mxu0
      %v652 = vadd.f32 %v302, %v651
      %653 = vmatmul.f32.gmra.mxu0 %v446
      %v654 = vpop.f32.mrf.mxu0
      %v655 = vadd.f32 %v302, %v654
      %656 = vmatmul.f32.gmra.mxu0 %v449
      %v657 = vpop.f32.mrf.mxu0
      %v658 = vadd.f32 %v302, %v657
      %659 = vmatmul.f32.gmra.mxu0 %v452
      %v660 = vpop.f32.mrf.mxu0
      %v661 = vadd.f32 %v302, %v660
      %662 = vmatmul.f32.gmra.mxu0 %v455
      %v663 = vpop.f32.mrf.mxu0
      %v664 = vadd.f32 %v302, %v663
      %665 = vmatmul.f32.gmra.mxu0 %v458
      %v666 = vpop.f32.mrf.mxu0
      %v667 = vadd.f32 %v302, %v666
      %668 = vmatmul.f32.gmra.mxu0 %v461
      %v669 = vpop.f32.mrf.mxu0
      %v670 = vadd.f32 %v302, %v669
      %671 = vmatmul.f32.gmra.mxu0 %v464
      %v672 = vpop.f32.mrf.mxu0
      %v673 = vadd.f32 %v302, %v672
      %674 = vmatmul.f32.gmra.mxu0 %v467
      %v675 = vpop.f32.mrf.mxu0
      %v676 = vadd.f32 %v302, %v675
      %677 = vmatmul.f32.gmra.mxu0 %v470
      %v678 = vpop.f32.mrf.mxu0
      %v679 = vadd.f32 %v302, %v678
      %680 = vmatmul.f32.gmra.mxu0 %v473
      %v681 = vpop.f32.mrf.mxu0
      %v682 = vadd.f32 %v302, %v681
      %683 = vmatmul.f32.gmra.mxu0 %v476
      %v684 = vpop.f32.mrf.mxu0
      %v685 = vadd.f32 %v302, %v684
      %686 = vmatmul.f32.gmra.mxu0 %v479
      %v687 = vpop.f32.mrf.mxu0
      %v688 = vadd.f32 %v302, %v687
      %689 = vmatmul.f32.gmra.mxu0 %v482
      %v690 = vpop.f32.mrf.mxu0
      %v691 = vadd.f32 %v302, %v690
      %692 = vmatmul.f32.gmra.mxu0 %v485
      %v693 = vpop.f32.mrf.mxu0
      %v694 = vadd.f32 %v302, %v693
      %695 = vmatmul.f32.gmra.mxu0 %v488
      %v696 = vpop.f32.mrf.mxu0
      %v697 = vadd.f32 %v302, %v696
      %698 = vmatmul.f32.gmra.mxu0 %v491
      %v699 = vpop.f32.mrf.mxu0
      %v700 = vadd.f32 %v302, %v699
      %701 = vmatmul.f32.gmra.mxu0 %v494
      %v702 = vpop.f32.mrf.mxu0
      %v703 = vadd.f32 %v302, %v702
      %704 = vmatmul.f32.gmra.mxu0 %v497
      %v705 = vpop.f32.mrf.mxu0
      %v706 = vadd.f32 %v302, %v705
      %707 = vdwg.mxu0
      %708 = vmatpush.msra.mxu0 0.0
      %709 = vmatpush.msra.mxu0 0.0
      %710 = vmatpush.msra.mxu0 0.0
      %711 = vmatpush.msra.mxu0 0.0
      %712 = vmatpush.msra.mxu0 0.0
      %713 = vmatpush.msra.mxu0 0.0
      %714 = vmatpush.msra.mxu0 0.0
      %715 = vmatpush.msra.mxu0 0.0
      %716 = vmatpush.msra.mxu0 0.0
      %717 = vmatpush.msra.mxu0 0.0
      %718 = vmatpush.msra.mxu0 0.0
      %719 = vmatpush.msra.mxu0 0.0
      %720 = vmatpush.msra.mxu0 %v299
      %721 = vmatpush.msra.mxu0 %v297
      %722 = vmatpush.msra.mxu0 %v295
      %723 = vmatpush.msra.mxu0 %v293
      %724 = vmatmul.f32.gmra.mxu0 %v308
      %v725 = vpop.f32.mrf.mxu0
      %v726 = vadd.f32 %v303, %v725
      %727 = vmatmul.f32.gmra.mxu0 %v311
      %v728 = vpop.f32.mrf.mxu0
      %v729 = vadd.f32 %v303, %v728
      %730 = vmatmul.f32.gmra.mxu0 %v314
      %v731 = vpop.f32.mrf.mxu0
      %v732 = vadd.f32 %v303, %v731
      %733 = vmatmul.f32.gmra.mxu0 %v317
      %v734 = vpop.f32.mrf.mxu0
      %v735 = vadd.f32 %v303, %v734
      %736 = vmatmul.f32.gmra.mxu0 %v320
      %v737 = vpop.f32.mrf.mxu0
      %v738 = vadd.f32 %v303, %v737
      %739 = vmatmul.f32.gmra.mxu0 %v323
      %v740 = vpop.f32.mrf.mxu0
      %v741 = vadd.f32 %v303, %v740
      %742 = vmatmul.f32.gmra.mxu0 %v326
      %v743 = vpop.f32.mrf.mxu0
      %v744 = vadd.f32 %v303, %v743
      %745 = vmatmul.f32.gmra.mxu0 %v329
      %v746 = vpop.f32.mrf.mxu0
      %v747 = vadd.f32 %v303, %v746
      %748 = vmatmul.f32.gmra.mxu0 %v332
      %v749 = vpop.f32.mrf.mxu0
      %v750 = vadd.f32 %v303, %v749
      %751 = vmatmul.f32.gmra.mxu0 %v335
      %v752 = vpop.f32.mrf.mxu0
      %v753 = vadd.f32 %v303, %v752
      %754 = vmatmul.f32.gmra.mxu0 %v338
      %v755 = vpop.f32.mrf.mxu0
      %v756 = vadd.f32 %v303, %v755
      %757 = vmatmul.f32.gmra.mxu0 %v341
      %v758 = vpop.f32.mrf.mxu0
      %v759 = vadd.f32 %v303, %v758
      %760 = vmatmul.f32.gmra.mxu0 %v344
      %v761 = vpop.f32.mrf.mxu0
      %v762 = vadd.f32 %v303, %v761
      %763 = vmatmul.f32.gmra.mxu0 %v347
      %v764 = vpop.f32.mrf.mxu0
      %v765 = vadd.f32 %v303, %v764
      %766 = vmatmul.f32.gmra.mxu0 %v350
      %v767 = vpop.f32.mrf.mxu0
      %v768 = vadd.f32 %v303, %v767
      %769 = vmatmul.f32.gmra.mxu0 %v353
      %v770 = vpop.f32.mrf.mxu0
      %v771 = vadd.f32 %v303, %v770
      %772 = vmatmul.f32.gmra.mxu0 %v356
      %v773 = vpop.f32.mrf.mxu0
      %v774 = vadd.f32 %v303, %v773
      %775 = vmatmul.f32.gmra.mxu0 %v359
      %v776 = vpop.f32.mrf.mxu0
      %v777 = vadd.f32 %v303, %v776
      %778 = vmatmul.f32.gmra.mxu0 %v362
      %v779 = vpop.f32.mrf.mxu0
      %v780 = vadd.f32 %v303, %v779
      %781 = vmatmul.f32.gmra.mxu0 %v365
      %v782 = vpop.f32.mrf.mxu0
      %v783 = vadd.f32 %v303, %v782
      %784 = vmatmul.f32.gmra.mxu0 %v368
      %v785 = vpop.f32.mrf.mxu0
      %v786 = vadd.f32 %v303, %v785
      %787 = vmatmul.f32.gmra.mxu0 %v371
      %v788 = vpop.f32.mrf.mxu0
      %v789 = vadd.f32 %v303, %v788
      %790 = vmatmul.f32.gmra.mxu0 %v374
      %v791 = vpop.f32.mrf.mxu0
      %v792 = vadd.f32 %v303, %v791
      %793 = vmatmul.f32.gmra.mxu0 %v377
      %v794 = vpop.f32.mrf.mxu0
      %v795 = vadd.f32 %v303, %v794
      %796 = vmatmul.f32.gmra.mxu0 %v380
      %v797 = vpop.f32.mrf.mxu0
      %v798 = vadd.f32 %v303, %v797
      %799 = vmatmul.f32.gmra.mxu0 %v383
      %v800 = vpop.f32.mrf.mxu0
      %v801 = vadd.f32 %v303, %v800
      %802 = vmatmul.f32.gmra.mxu0 %v386
      %v803 = vpop.f32.mrf.mxu0
      %v804 = vadd.f32 %v303, %v803
      %805 = vmatmul.f32.gmra.mxu0 %v389
      %v806 = vpop.f32.mrf.mxu0
      %v807 = vadd.f32 %v303, %v806
      %808 = vmatmul.f32.gmra.mxu0 %v392
      %v809 = vpop.f32.mrf.mxu0
      %v810 = vadd.f32 %v303, %v809
      %811 = vmatmul.f32.gmra.mxu0 %v395
      %v812 = vpop.f32.mrf.mxu0
      %v813 = vadd.f32 %v303, %v812
      %814 = vmatmul.f32.gmra.mxu0 %v398
      %v815 = vpop.f32.mrf.mxu0
      %v816 = vadd.f32 %v303, %v815
      %817 = vmatmul.f32.gmra.mxu0 %v401
      %v818 = vpop.f32.mrf.mxu0
      %v819 = vadd.f32 %v303, %v818
      %820 = vmatmul.f32.gmra.mxu0 %v404
      %v821 = vpop.f32.mrf.mxu0
      %v822 = vadd.f32 %v303, %v821
      %823 = vmatmul.f32.gmra.mxu0 %v407
      %v824 = vpop.f32.mrf.mxu0
      %v825 = vadd.f32 %v303, %v824
      %826 = vmatmul.f32.gmra.mxu0 %v410
      %v827 = vpop.f32.mrf.mxu0
      %v828 = vadd.f32 %v303, %v827
      %829 = vmatmul.f32.gmra.mxu0 %v413
      %v830 = vpop.f32.mrf.mxu0
      %v831 = vadd.f32 %v303, %v830
      %832 = vmatmul.f32.gmra.mxu0 %v416
      %v833 = vpop.f32.mrf.mxu0
      %v834 = vadd.f32 %v303, %v833
      %835 = vmatmul.f32.gmra.mxu0 %v419
      %v836 = vpop.f32.mrf.mxu0
      %v837 = vadd.f32 %v303, %v836
      %838 = vmatmul.f32.gmra.mxu0 %v422
      %v839 = vpop.f32.mrf.mxu0
      %v840 = vadd.f32 %v303, %v839
      %841 = vmatmul.f32.gmra.mxu0 %v425
      %v842 = vpop.f32.mrf.mxu0
      %v843 = vadd.f32 %v303, %v842
      %844 = vmatmul.f32.gmra.mxu0 %v428
      %v845 = vpop.f32.mrf.mxu0
      %v846 = vadd.f32 %v303, %v845
      %847 = vmatmul.f32.gmra.mxu0 %v431
      %v848 = vpop.f32.mrf.mxu0
      %v849 = vadd.f32 %v303, %v848
      %850 = vmatmul.f32.gmra.mxu0 %v434
      %v851 = vpop.f32.mrf.mxu0
      %v852 = vadd.f32 %v303, %v851
      %853 = vmatmul.f32.gmra.mxu0 %v437
      %v854 = vpop.f32.mrf.mxu0
      %v855 = vadd.f32 %v303, %v854
      %856 = vmatmul.f32.gmra.mxu0 %v440
      %v857 = vpop.f32.mrf.mxu0
      %v858 = vadd.f32 %v303, %v857
      %859 = vmatmul.f32.gmra.mxu0 %v443
      %v860 = vpop.f32.mrf.mxu0
      %v861 = vadd.f32 %v303, %v860
      %862 = vmatmul.f32.gmra.mxu0 %v446
      %v863 = vpop.f32.mrf.mxu0
      %v864 = vadd.f32 %v303, %v863
      %865 = vmatmul.f32.gmra.mxu0 %v449
      %v866 = vpop.f32.mrf.mxu0
      %v867 = vadd.f32 %v303, %v866
      %868 = vmatmul.f32.gmra.mxu0 %v452
      %v869 = vpop.f32.mrf.mxu0
      %v870 = vadd.f32 %v303, %v869
      %871 = vmatmul.f32.gmra.mxu0 %v455
      %v872 = vpop.f32.mrf.mxu0
      %v873 = vadd.f32 %v303, %v872
      %874 = vmatmul.f32.gmra.mxu0 %v458
      %v875 = vpop.f32.mrf.mxu0
      %v876 = vadd.f32 %v303, %v875
      %877 = vmatmul.f32.gmra.mxu0 %v461
      %v878 = vpop.f32.mrf.mxu0
      %v879 = vadd.f32 %v303, %v878
      %880 = vmatmul.f32.gmra.mxu0 %v464
      %v881 = vpop.f32.mrf.mxu0
      %v882 = vadd.f32 %v303, %v881
      %883 = vmatmul.f32.gmra.mxu0 %v467
      %v884 = vpop.f32.mrf.mxu0
      %v885 = vadd.f32 %v303, %v884
      %886 = vmatmul.f32.gmra.mxu0 %v470
      %v887 = vpop.f32.mrf.mxu0
      %v888 = vadd.f32 %v303, %v887
      %889 = vmatmul.f32.gmra.mxu0 %v473
      %v890 = vpop.f32.mrf.mxu0
      %v891 = vadd.f32 %v303, %v890
      %892 = vmatmul.f32.gmra.mxu0 %v476
      %v893 = vpop.f32.mrf.mxu0
      %v894 = vadd.f32 %v303, %v893
      %895 = vmatmul.f32.gmra.mxu0 %v479
      %v896 = vpop.f32.mrf.mxu0
      %v897 = vadd.f32 %v303, %v896
      %898 = vmatmul.f32.gmra.mxu0 %v482
      %v899 = vpop.f32.mrf.mxu0
      %v900 = vadd.f32 %v303, %v899
      %901 = vmatmul.f32.gmra.mxu0 %v485
      %v902 = vpop.f32.mrf.mxu0
      %v903 = vadd.f32 %v303, %v902
      %904 = vmatmul.f32.gmra.mxu0 %v488
      %v905 = vpop.f32.mrf.mxu0
      %v906 = vadd.f32 %v303, %v905
      %907 = vmatmul.f32.gmra.mxu0 %v491
      %v908 = vpop.f32.mrf.mxu0
      %v909 = vadd.f32 %v303, %v908
      %910 = vmatmul.f32.gmra.mxu0 %v494
      %v911 = vpop.f32.mrf.mxu0
      %v912 = vadd.f32 %v303, %v911
      %913 = vmatmul.f32.gmra.mxu0 %v497
      %v914 = vpop.f32.mrf.mxu0
      %v915 = vadd.f32 %v303, %v914
      %916 = vdwg.mxu0
      %v917 = vmax.f32 %v517, 0.0
      %v918 = vmax.f32 %v726, 0.0
      %v919 = vmax.f32 %v520, 0.0
      %v920 = vmax.f32 %v729, 0.0
      %v921 = vmax.f32 %v523, 0.0
      %v922 = vmax.f32 %v732, 0.0
      %v923 = vmax.f32 %v526, 0.0
      %v924 = vmax.f32 %v735, 0.0
      %v925 = vmax.f32 %v529, 0.0
      %v926 = vmax.f32 %v738, 0.0
      %v927 = vmax.f32 %v532, 0.0
      %v928 = vmax.f32 %v741, 0.0
      %v929 = vmax.f32 %v535, 0.0
      %v930 = vmax.f32 %v744, 0.0
      %v931 = vmax.f32 %v538, 0.0
      %v932 = vmax.f32 %v747, 0.0
      %v933 = vmax.f32 %v541, 0.0
      %v934 = vmax.f32 %v750, 0.0
      %v935 = vmax.f32 %v544, 0.0
      %v936 = vmax.f32 %v753, 0.0
      %v937 = vmax.f32 %v547, 0.0
      %v938 = vmax.f32 %v756, 0.0
      %v939 = vmax.f32 %v550, 0.0
      %v940 = vmax.f32 %v759, 0.0
      %v941 = vmax.f32 %v553, 0.0
      %v942 = vmax.f32 %v762, 0.0
      %v943 = vmax.f32 %v556, 0.0
      %v944 = vmax.f32 %v765, 0.0
      %v945 = vmax.f32 %v559, 0.0
      %v946 = vmax.f32 %v768, 0.0
      %v947 = vmax.f32 %v562, 0.0
      %v948 = vmax.f32 %v771, 0.0
      %v949 = vmax.f32 %v565, 0.0
      %v950 = vmax.f32 %v774, 0.0
      %v951 = vmax.f32 %v568, 0.0
      %v952 = vmax.f32 %v777, 0.0
      %v953 = vmax.f32 %v571, 0.0
      %v954 = vmax.f32 %v780, 0.0
      %v955 = vmax.f32 %v574, 0.0
      %v956 = vmax.f32 %v783, 0.0
      %v957 = vmax.f32 %v577, 0.0
      %v958 = vmax.f32 %v786, 0.0
      %v959 = vmax.f32 %v580, 0.0
      %v960 = vmax.f32 %v789, 0.0
      %v961 = vmax.f32 %v583, 0.0
      %v962 = vmax.f32 %v792, 0.0
      %v963 = vmax.f32 %v586, 0.0
      %v964 = vmax.f32 %v795, 0.0
      %v965 = vmax.f32 %v589, 0.0
      %v966 = vmax.f32 %v798, 0.0
      %v967 = vmax.f32 %v592, 0.0
      %v968 = vmax.f32 %v801, 0.0
      %v969 = vmax.f32 %v595, 0.0
      %v970 = vmax.f32 %v804, 0.0
      %v971 = vmax.f32 %v598, 0.0
      %v972 = vmax.f32 %v807, 0.0
      %v973 = vmax.f32 %v601, 0.0
      %v974 = vmax.f32 %v810, 0.0
      %v975 = vmax.f32 %v604, 0.0
      %v976 = vmax.f32 %v813, 0.0
      %v977 = vmax.f32 %v607, 0.0
      %v978 = vmax.f32 %v816, 0.0
      %v979 = vmax.f32 %v610, 0.0
      %v980 = vmax.f32 %v819, 0.0
      %v981 = vmax.f32 %v613, 0.0
      %v982 = vmax.f32 %v822, 0.0
      %v983 = vmax.f32 %v616, 0.0
      %v984 = vmax.f32 %v825, 0.0
      %v985 = vmax.f32 %v619, 0.0
      %v986 = vmax.f32 %v828, 0.0
      %v987 = vmax.f32 %v622, 0.0
      %v988 = vmax.f32 %v831, 0.0
      %v989 = vmax.f32 %v625, 0.0
      %v990 = vmax.f32 %v834, 0.0
      %v991 = vmax.f32 %v628, 0.0
      %v992 = vmax.f32 %v837, 0.0
      %v993 = vmax.f32 %v631, 0.0
      %v994 = vmax.f32 %v840, 0.0
      %v995 = vmax.f32 %v634, 0.0
      %v996 = vmax.f32 %v843, 0.0
      %v997 = vmax.f32 %v637, 0.0
      %v998 = vmax.f32 %v846, 0.0
      %v999 = vmax.f32 %v640, 0.0
      %v1000 = vmax.f32 %v849, 0.0
      %v1001 = vmax.f32 %v643, 0.0
      %v1002 = vmax.f32 %v852, 0.0
      %v1003 = vmax.f32 %v646, 0.0
      %v1004 = vmax.f32 %v855, 0.0
      %v1005 = vmax.f32 %v649, 0.0
      %v1006 = vmax.f32 %v858, 0.0
      %v1007 = vmax.f32 %v652, 0.0
      %v1008 = vmax.f32 %v861, 0.0
      %v1009 = vmax.f32 %v655, 0.0
      %v1010 = vmax.f32 %v864, 0.0
      %v1011 = vmax.f32 %v658, 0.0
      %v1012 = vmax.f32 %v867, 0.0
      %v1013 = vmax.f32 %v661, 0.0
      %v1014 = vmax.f32 %v870, 0.0
      %v1015 = vmax.f32 %v664, 0.0
      %v1016 = vmax.f32 %v873, 0.0
      %v1017 = vmax.f32 %v667, 0.0
      %v1018 = vmax.f32 %v876, 0.0
      %v1019 = vmax.f32 %v670, 0.0
      %v1020 = vmax.f32 %v879, 0.0
      %v1021 = vmax.f32 %v673, 0.0
      %v1022 = vmax.f32 %v882, 0.0
      %v1023 = vmax.f32 %v676, 0.0
      %v1024 = vmax.f32 %v885, 0.0
      %v1025 = vmax.f32 %v679, 0.0
      %v1026 = vmax.f32 %v888, 0.0
      %v1027 = vmax.f32 %v682, 0.0
      %v1028 = vmax.f32 %v891, 0.0
      %v1029 = vmax.f32 %v685, 0.0
      %v1030 = vmax.f32 %v894, 0.0
      %v1031 = vmax.f32 %v688, 0.0
      %v1032 = vmax.f32 %v897, 0.0
      %v1033 = vmax.f32 %v691, 0.0
      %v1034 = vmax.f32 %v900, 0.0
      %v1035 = vmax.f32 %v694, 0.0
      %v1036 = vmax.f32 %v903, 0.0
      %v1037 = vmax.f32 %v697, 0.0
      %v1038 = vmax.f32 %v906, 0.0
      %v1039 = vmax.f32 %v700, 0.0
      %v1040 = vmax.f32 %v909, 0.0
      %v1041 = vmax.f32 %v703, 0.0
      %v1042 = vmax.f32 %v912, 0.0
      %v1043 = vmax.f32 %v706, 0.0
      %v1044 = vmax.f32 %v915, 0.0
      %v1045 = vld [vmem:[%s3] sm:$0xff]
      %v1046 = vld [vmem:[%s3 + $0x8] sm:$0xff]
      %v1047 = vld [vmem:[%s3 + $0x10] sm:$0xff]
      %v1048 = vld [vmem:[%s3 + $0x18] sm:$0xff]
      %v1049 = vld [vmem:[%s3 + $0x20] sm:$0xff]
      %v1050 = vld [vmem:[%s3 + $0x28] sm:$0xff]
      %v1051 = vld [vmem:[%s3 + $0x30] sm:$0xff]
      %v1052 = vld [vmem:[%s3 + $0x38] sm:$0xff]
      %v1053 = vld [vmem:[%s3 + $0x40] sm:$0xff]
      %v1054 = vld [vmem:[%s3 + $0x48] sm:$0xff]
      %v1055 = vld [vmem:[%s3 + $0x50] sm:$0xff]
      %v1056 = vld [vmem:[%s3 + $0x58] sm:$0xff]
      %v1057 = vld [vmem:[%s3 + $0x60] sm:$0xff]
      %v1058 = vld [vmem:[%s3 + $0x68] sm:$0xff]
      %v1059 = vld [vmem:[%s3 + $0x70] sm:$0xff]
      %v1060 = vld [vmem:[%s3 + $0x78] sm:$0xff]
      %v1061 = vld [vmem:[%s3 + $0x80] sm:$0xff]
      %v1062 = vld [vmem:[%s3 + $0x88] sm:$0xff]
      %v1063 = vld [vmem:[%s3 + $0x90] sm:$0xff]
      %v1064 = vld [vmem:[%s3 + $0x98] sm:$0xff]
      %v1065 = vld [vmem:[%s3 + $0xa0] sm:$0xff]
      %v1066 = vld [vmem:[%s3 + $0xa8] sm:$0xff]
      %v1067 = vld [vmem:[%s3 + $0xb0] sm:$0xff]
      %v1068 = vld [vmem:[%s3 + $0xb8] sm:$0xff]
      %v1069 = vld [vmem:[%s3 + $0xc0] sm:$0xff]
      %v1070 = vld [vmem:[%s3 + $0xc8] sm:$0xff]
      %v1071 = vld [vmem:[%s3 + $0xd0] sm:$0xff]
      %v1072 = vld [vmem:[%s3 + $0xd8] sm:$0xff]
      %v1073 = vld [vmem:[%s3 + $0xe0] sm:$0xff]
      %v1074 = vld [vmem:[%s3 + $0xe8] sm:$0xff]
      %v1075 = vld [vmem:[%s3 + $0xf0] sm:$0xff]
      %v1076 = vld [vmem:[%s3 + $0xf8] sm:$0xff]
      %v1077 = vld [vmem:[%s4] sm:$0x1]
      %v1079 = vperm.slane %v1077, 0
      %1081 = vmatpush.msra.mxu0 %v1060
      %1082 = vmatpush.msra.mxu0 %v1059
      %1083 = vmatpush.msra.mxu0 %v1058
      %1084 = vmatpush.msra.mxu0 %v1057
      %1085 = vmatpush.msra.mxu0 %v1056
      %1086 = vmatpush.msra.mxu0 %v1055
      %1087 = vmatpush.msra.mxu0 %v1054
      %1088 = vmatpush.msra.mxu0 %v1053
      %1089 = vmatpush.msra.mxu0 %v1052
      %1090 = vmatpush.msra.mxu0 %v1051
      %1091 = vmatpush.msra.mxu0 %v1050
      %1092 = vmatpush.msra.mxu0 %v1049
      %1093 = vmatpush.msra.mxu0 %v1048
      %1094 = vmatpush.msra.mxu0 %v1047
      %1095 = vmatpush.msra.mxu0 %v1046
      %1096 = vmatpush.msra.mxu0 %v1045
      %1097 = vmatmul.f32.gmra.mxu0 %v917
      %v1098 = vpop.f32.mrf.mxu0
      %v1099 = vadd.f32 %v1079, %v1098
      %1100 = vmatmul.f32.gmra.mxu0 %v919
      %v1101 = vpop.f32.mrf.mxu0
      %v1102 = vadd.f32 %v1079, %v1101
      %1103 = vmatmul.f32.gmra.mxu0 %v921
      %v1104 = vpop.f32.mrf.mxu0
      %v1105 = vadd.f32 %v1079, %v1104
      %1106 = vmatmul.f32.gmra.mxu0 %v923
      %v1107 = vpop.f32.mrf.mxu0
      %v1108 = vadd.f32 %v1079, %v1107
      %1109 = vmatmul.f32.gmra.mxu0 %v925
      %v1110 = vpop.f32.mrf.mxu0
      %v1111 = vadd.f32 %v1079, %v1110
      %1112 = vmatmul.f32.gmra.mxu0 %v927
      %v1113 = vpop.f32.mrf.mxu0
      %v1114 = vadd.f32 %v1079, %v1113
      %1115 = vmatmul.f32.gmra.mxu0 %v929
      %v1116 = vpop.f32.mrf.mxu0
      %v1117 = vadd.f32 %v1079, %v1116
      %1118 = vmatmul.f32.gmra.mxu0 %v931
      %v1119 = vpop.f32.mrf.mxu0
      %v1120 = vadd.f32 %v1079, %v1119
      %1121 = vmatmul.f32.gmra.mxu0 %v933
      %v1122 = vpop.f32.mrf.mxu0
      %v1123 = vadd.f32 %v1079, %v1122
      %1124 = vmatmul.f32.gmra.mxu0 %v935
      %v1125 = vpop.f32.mrf.mxu0
      %v1126 = vadd.f32 %v1079, %v1125
      %1127 = vmatmul.f32.gmra.mxu0 %v937
      %v1128 = vpop.f32.mrf.mxu0
      %v1129 = vadd.f32 %v1079, %v1128
      %1130 = vmatmul.f32.gmra.mxu0 %v939
      %v1131 = vpop.f32.mrf.mxu0
      %v1132 = vadd.f32 %v1079, %v1131
      %1133 = vmatmul.f32.gmra.mxu0 %v941
      %v1134 = vpop.f32.mrf.mxu0
      %v1135 = vadd.f32 %v1079, %v1134
      %1136 = vmatmul.f32.gmra.mxu0 %v943
      %v1137 = vpop.f32.mrf.mxu0
      %v1138 = vadd.f32 %v1079, %v1137
      %1139 = vmatmul.f32.gmra.mxu0 %v945
      %v1140 = vpop.f32.mrf.mxu0
      %v1141 = vadd.f32 %v1079, %v1140
      %1142 = vmatmul.f32.gmra.mxu0 %v947
      %v1143 = vpop.f32.mrf.mxu0
      %v1144 = vadd.f32 %v1079, %v1143
      %1145 = vmatmul.f32.gmra.mxu0 %v949
      %v1146 = vpop.f32.mrf.mxu0
      %v1147 = vadd.f32 %v1079, %v1146
      %1148 = vmatmul.f32.gmra.mxu0 %v951
      %v1149 = vpop.f32.mrf.mxu0
      %v1150 = vadd.f32 %v1079, %v1149
      %1151 = vmatmul.f32.gmra.mxu0 %v953
      %v1152 = vpop.f32.mrf.mxu0
      %v1153 = vadd.f32 %v1079, %v1152
      %1154 = vmatmul.f32.gmra.mxu0 %v955
      %v1155 = vpop.f32.mrf.mxu0
      %v1156 = vadd.f32 %v1079, %v1155
      %1157 = vmatmul.f32.gmra.mxu0 %v957
      %v1158 = vpop.f32.mrf.mxu0
      %v1159 = vadd.f32 %v1079, %v1158
      %1160 = vmatmul.f32.gmra.mxu0 %v959
      %v1161 = vpop.f32.mrf.mxu0
      %v1162 = vadd.f32 %v1079, %v1161
      %1163 = vmatmul.f32.gmra.mxu0 %v961
      %v1164 = vpop.f32.mrf.mxu0
      %v1165 = vadd.f32 %v1079, %v1164
      %1166 = vmatmul.f32.gmra.mxu0 %v963
      %v1167 = vpop.f32.mrf.mxu0
      %v1168 = vadd.f32 %v1079, %v1167
      %1169 = vmatmul.f32.gmra.mxu0 %v965
      %v1170 = vpop.f32.mrf.mxu0
      %v1171 = vadd.f32 %v1079, %v1170
      %1172 = vmatmul.f32.gmra.mxu0 %v967
      %v1173 = vpop.f32.mrf.mxu0
      %v1174 = vadd.f32 %v1079, %v1173
      %1175 = vmatmul.f32.gmra.mxu0 %v969
      %v1176 = vpop.f32.mrf.mxu0
      %v1177 = vadd.f32 %v1079, %v1176
      %1178 = vmatmul.f32.gmra.mxu0 %v971
      %v1179 = vpop.f32.mrf.mxu0
      %v1180 = vadd.f32 %v1079, %v1179
      %1181 = vmatmul.f32.gmra.mxu0 %v973
      %v1182 = vpop.f32.mrf.mxu0
      %v1183 = vadd.f32 %v1079, %v1182
      %1184 = vmatmul.f32.gmra.mxu0 %v975
      %v1185 = vpop.f32.mrf.mxu0
      %v1186 = vadd.f32 %v1079, %v1185
      %1187 = vmatmul.f32.gmra.mxu0 %v977
      %v1188 = vpop.f32.mrf.mxu0
      %v1189 = vadd.f32 %v1079, %v1188
      %1190 = vmatmul.f32.gmra.mxu0 %v979
      %v1191 = vpop.f32.mrf.mxu0
      %v1192 = vadd.f32 %v1079, %v1191
      %1193 = vmatmul.f32.gmra.mxu0 %v981
      %v1194 = vpop.f32.mrf.mxu0
      %v1195 = vadd.f32 %v1079, %v1194
      %1196 = vmatmul.f32.gmra.mxu0 %v983
      %v1197 = vpop.f32.mrf.mxu0
      %v1198 = vadd.f32 %v1079, %v1197
      %1199 = vmatmul.f32.gmra.mxu0 %v985
      %v1200 = vpop.f32.mrf.mxu0
      %v1201 = vadd.f32 %v1079, %v1200
      %1202 = vmatmul.f32.gmra.mxu0 %v987
      %v1203 = vpop.f32.mrf.mxu0
      %v1204 = vadd.f32 %v1079, %v1203
      %1205 = vmatmul.f32.gmra.mxu0 %v989
      %v1206 = vpop.f32.mrf.mxu0
      %v1207 = vadd.f32 %v1079, %v1206
      %1208 = vmatmul.f32.gmra.mxu0 %v991
      %v1209 = vpop.f32.mrf.mxu0
      %v1210 = vadd.f32 %v1079, %v1209
      %1211 = vmatmul.f32.gmra.mxu0 %v993
      %v1212 = vpop.f32.mrf.mxu0
      %v1213 = vadd.f32 %v1079, %v1212
      %1214 = vmatmul.f32.gmra.mxu0 %v995
      %v1215 = vpop.f32.mrf.mxu0
      %v1216 = vadd.f32 %v1079, %v1215
      %1217 = vmatmul.f32.gmra.mxu0 %v997
      %v1218 = vpop.f32.mrf.mxu0
      %v1219 = vadd.f32 %v1079, %v1218
      %1220 = vmatmul.f32.gmra.mxu0 %v999
      %v1221 = vpop.f32.mrf.mxu0
      %v1222 = vadd.f32 %v1079, %v1221
      %1223 = vmatmul.f32.gmra.mxu0 %v1001
      %v1224 = vpop.f32.mrf.mxu0
      %v1225 = vadd.f32 %v1079, %v1224
      %1226 = vmatmul.f32.gmra.mxu0 %v1003
      %v1227 = vpop.f32.mrf.mxu0
      %v1228 = vadd.f32 %v1079, %v1227
      %1229 = vmatmul.f32.gmra.mxu0 %v1005
      %v1230 = vpop.f32.mrf.mxu0
      %v1231 = vadd.f32 %v1079, %v1230
      %1232 = vmatmul.f32.gmra.mxu0 %v1007
      %v1233 = vpop.f32.mrf.mxu0
      %v1234 = vadd.f32 %v1079, %v1233
      %1235 = vmatmul.f32.gmra.mxu0 %v1009
      %v1236 = vpop.f32.mrf.mxu0
      %v1237 = vadd.f32 %v1079, %v1236
      %1238 = vmatmul.f32.gmra.mxu0 %v1011
      %v1239 = vpop.f32.mrf.mxu0
      %v1240 = vadd.f32 %v1079, %v1239
      %1241 = vmatmul.f32.gmra.mxu0 %v1013
      %v1242 = vpop.f32.mrf.mxu0
      %v1243 = vadd.f32 %v1079, %v1242
      %1244 = vmatmul.f32.gmra.mxu0 %v1015
      %v1245 = vpop.f32.mrf.mxu0
      %v1246 = vadd.f32 %v1079, %v1245
      %1247 = vmatmul.f32.gmra.mxu0 %v1017
      %v1248 = vpop.f32.mrf.mxu0
      %v1249 = vadd.f32 %v1079, %v1248
      %1250 = vmatmul.f32.gmra.mxu0 %v1019
      %v1251 = vpop.f32.mrf.mxu0
      %v1252 = vadd.f32 %v1079, %v1251
      %1253 = vmatmul.f32.gmra.mxu0 %v1021
      %v1254 = vpop.f32.mrf.mxu0
      %v1255 = vadd.f32 %v1079, %v1254
      %1256 = vmatmul.f32.gmra.mxu0 %v1023
      %v1257 = vpop.f32.mrf.mxu0
      %v1258 = vadd.f32 %v1079, %v1257
      %1259 = vmatmul.f32.gmra.mxu0 %v1025
      %v1260 = vpop.f32.mrf.mxu0
      %v1261 = vadd.f32 %v1079, %v1260
      %1262 = vmatmul.f32.gmra.mxu0 %v1027
      %v1263 = vpop.f32.mrf.mxu0
      %v1264 = vadd.f32 %v1079, %v1263
      %1265 = vmatmul.f32.gmra.mxu0 %v1029
      %v1266 = vpop.f32.mrf.mxu0
      %v1267 = vadd.f32 %v1079, %v1266
      %1268 = vmatmul.f32.gmra.mxu0 %v1031
      %v1269 = vpop.f32.mrf.mxu0
      %v1270 = vadd.f32 %v1079, %v1269
      %1271 = vmatmul.f32.gmra.mxu0 %v1033
      %v1272 = vpop.f32.mrf.mxu0
      %v1273 = vadd.f32 %v1079, %v1272
      %1274 = vmatmul.f32.gmra.mxu0 %v1035
      %v1275 = vpop.f32.mrf.mxu0
      %v1276 = vadd.f32 %v1079, %v1275
      %1277 = vmatmul.f32.gmra.mxu0 %v1037
      %v1278 = vpop.f32.mrf.mxu0
      %v1279 = vadd.f32 %v1079, %v1278
      %1280 = vmatmul.f32.gmra.mxu0 %v1039
      %v1281 = vpop.f32.mrf.mxu0
      %v1282 = vadd.f32 %v1079, %v1281
      %1283 = vmatmul.f32.gmra.mxu0 %v1041
      %v1284 = vpop.f32.mrf.mxu0
      %v1285 = vadd.f32 %v1079, %v1284
      %1286 = vmatmul.f32.gmra.mxu0 %v1043
      %v1287 = vpop.f32.mrf.mxu0
      %v1288 = vadd.f32 %v1079, %v1287
      %1289 = vdwg.mxu0
      %1290 = vmatpush.msra.mxu0 %v1076
      %1291 = vmatpush.msra.mxu0 %v1075
      %1292 = vmatpush.msra.mxu0 %v1074
      %1293 = vmatpush.msra.mxu0 %v1073
      %1294 = vmatpush.msra.mxu0 %v1072
      %1295 = vmatpush.msra.mxu0 %v1071
      %1296 = vmatpush.msra.mxu0 %v1070
      %1297 = vmatpush.msra.mxu0 %v1069
      %1298 = vmatpush.msra.mxu0 %v1068
      %1299 = vmatpush.msra.mxu0 %v1067
      %1300 = vmatpush.msra.mxu0 %v1066
      %1301 = vmatpush.msra.mxu0 %v1065
      %1302 = vmatpush.msra.mxu0 %v1064
      %1303 = vmatpush.msra.mxu0 %v1063
      %1304 = vmatpush.msra.mxu0 %v1062
      %1305 = vmatpush.msra.mxu0 %v1061
      %1306 = vmatmul.f32.gmra.mxu0 %v918
      %v1307 = vpop.f32.mrf.mxu0
      %v1308 = vadd.f32 %v1099, %v1307
      %1309 = vmatmul.f32.gmra.mxu0 %v920
      %v1310 = vpop.f32.mrf.mxu0
      %v1311 = vadd.f32 %v1102, %v1310
      %1312 = vmatmul.f32.gmra.mxu0 %v922
      %v1313 = vpop.f32.mrf.mxu0
      %v1314 = vadd.f32 %v1105, %v1313
      %1315 = vmatmul.f32.gmra.mxu0 %v924
      %v1316 = vpop.f32.mrf.mxu0
      %v1317 = vadd.f32 %v1108, %v1316
      %1318 = vmatmul.f32.gmra.mxu0 %v926
      %v1319 = vpop.f32.mrf.mxu0
      %v1320 = vadd.f32 %v1111, %v1319
      %1321 = vmatmul.f32.gmra.mxu0 %v928
      %v1322 = vpop.f32.mrf.mxu0
      %v1323 = vadd.f32 %v1114, %v1322
      %1324 = vmatmul.f32.gmra.mxu0 %v930
      %v1325 = vpop.f32.mrf.mxu0
      %v1326 = vadd.f32 %v1117, %v1325
      %1327 = vmatmul.f32.gmra.mxu0 %v932
      %v1328 = vpop.f32.mrf.mxu0
      %v1329 = vadd.f32 %v1120, %v1328
      %1330 = vmatmul.f32.gmra.mxu0 %v934
      %v1331 = vpop.f32.mrf.mxu0
      %v1332 = vadd.f32 %v1123, %v1331
      %1333 = vmatmul.f32.gmra.mxu0 %v936
      %v1334 = vpop.f32.mrf.mxu0
      %v1335 = vadd.f32 %v1126, %v1334
      %1336 = vmatmul.f32.gmra.mxu0 %v938
      %v1337 = vpop.f32.mrf.mxu0
      %v1338 = vadd.f32 %v1129, %v1337
      %1339 = vmatmul.f32.gmra.mxu0 %v940
      %v1340 = vpop.f32.mrf.mxu0
      %v1341 = vadd.f32 %v1132, %v1340
      %1342 = vmatmul.f32.gmra.mxu0 %v942
      %v1343 = vpop.f32.mrf.mxu0
      %v1344 = vadd.f32 %v1135, %v1343
      %1345 = vmatmul.f32.gmra.mxu0 %v944
      %v1346 = vpop.f32.mrf.mxu0
      %v1347 = vadd.f32 %v1138, %v1346
      %1348 = vmatmul.f32.gmra.mxu0 %v946
      %v1349 = vpop.f32.mrf.mxu0
      %v1350 = vadd.f32 %v1141, %v1349
      %1351 = vmatmul.f32.gmra.mxu0 %v948
      %v1352 = vpop.f32.mrf.mxu0
      %v1353 = vadd.f32 %v1144, %v1352
      %1354 = vmatmul.f32.gmra.mxu0 %v950
      %v1355 = vpop.f32.mrf.mxu0
      %v1356 = vadd.f32 %v1147, %v1355
      %1357 = vmatmul.f32.gmra.mxu0 %v952
      %v1358 = vpop.f32.mrf.mxu0
      %v1359 = vadd.f32 %v1150, %v1358
      %1360 = vmatmul.f32.gmra.mxu0 %v954
      %v1361 = vpop.f32.mrf.mxu0
      %v1362 = vadd.f32 %v1153, %v1361
      %1363 = vmatmul.f32.gmra.mxu0 %v956
      %v1364 = vpop.f32.mrf.mxu0
      %v1365 = vadd.f32 %v1156, %v1364
      %1366 = vmatmul.f32.gmra.mxu0 %v958
      %v1367 = vpop.f32.mrf.mxu0
      %v1368 = vadd.f32 %v1159, %v1367
      %1369 = vmatmul.f32.gmra.mxu0 %v960
      %v1370 = vpop.f32.mrf.mxu0
      %v1371 = vadd.f32 %v1162, %v1370
      %1372 = vmatmul.f32.gmra.mxu0 %v962
      %v1373 = vpop.f32.mrf.mxu0
      %v1374 = vadd.f32 %v1165, %v1373
      %1375 = vmatmul.f32.gmra.mxu0 %v964
      %v1376 = vpop.f32.mrf.mxu0
      %v1377 = vadd.f32 %v1168, %v1376
      %1378 = vmatmul.f32.gmra.mxu0 %v966
      %v1379 = vpop.f32.mrf.mxu0
      %v1380 = vadd.f32 %v1171, %v1379
      %1381 = vmatmul.f32.gmra.mxu0 %v968
      %v1382 = vpop.f32.mrf.mxu0
      %v1383 = vadd.f32 %v1174, %v1382
      %1384 = vmatmul.f32.gmra.mxu0 %v970
      %v1385 = vpop.f32.mrf.mxu0
      %v1386 = vadd.f32 %v1177, %v1385
      %1387 = vmatmul.f32.gmra.mxu0 %v972
      %v1388 = vpop.f32.mrf.mxu0
      %v1389 = vadd.f32 %v1180, %v1388
      %1390 = vmatmul.f32.gmra.mxu0 %v974
      %v1391 = vpop.f32.mrf.mxu0
      %v1392 = vadd.f32 %v1183, %v1391
      %1393 = vmatmul.f32.gmra.mxu0 %v976
      %v1394 = vpop.f32.mrf.mxu0
      %v1395 = vadd.f32 %v1186, %v1394
      %1396 = vmatmul.f32.gmra.mxu0 %v978
      %v1397 = vpop.f32.mrf.mxu0
      %v1398 = vadd.f32 %v1189, %v1397
      %1399 = vmatmul.f32.gmra.mxu0 %v980
      %v1400 = vpop.f32.mrf.mxu0
      %v1401 = vadd.f32 %v1192, %v1400
      %1402 = vmatmul.f32.gmra.mxu0 %v982
      %v1403 = vpop.f32.mrf.mxu0
      %v1404 = vadd.f32 %v1195, %v1403
      %1405 = vmatmul.f32.gmra.mxu0 %v984
      %v1406 = vpop.f32.mrf.mxu0
      %v1407 = vadd.f32 %v1198, %v1406
      %1408 = vmatmul.f32.gmra.mxu0 %v986
      %v1409 = vpop.f32.mrf.mxu0
      %v1410 = vadd.f32 %v1201, %v1409
      %1411 = vmatmul.f32.gmra.mxu0 %v988
      %v1412 = vpop.f32.mrf.mxu0
      %v1413 = vadd.f32 %v1204, %v1412
      %1414 = vmatmul.f32.gmra.mxu0 %v990
      %v1415 = vpop.f32.mrf.mxu0
      %v1416 = vadd.f32 %v1207, %v1415
      %1417 = vmatmul.f32.gmra.mxu0 %v992
      %v1418 = vpop.f32.mrf.mxu0
      %v1419 = vadd.f32 %v1210, %v1418
      %1420 = vmatmul.f32.gmra.mxu0 %v994
      %v1421 = vpop.f32.mrf.mxu0
      %v1422 = vadd.f32 %v1213, %v1421
      %1423 = vmatmul.f32.gmra.mxu0 %v996
      %v1424 = vpop.f32.mrf.mxu0
      %v1425 = vadd.f32 %v1216, %v1424
      %1426 = vmatmul.f32.gmra.mxu0 %v998
      %v1427 = vpop.f32.mrf.mxu0
      %v1428 = vadd.f32 %v1219, %v1427
      %1429 = vmatmul.f32.gmra.mxu0 %v1000
      %v1430 = vpop.f32.mrf.mxu0
      %v1431 = vadd.f32 %v1222, %v1430
      %1432 = vmatmul.f32.gmra.mxu0 %v1002
      %v1433 = vpop.f32.mrf.mxu0
      %v1434 = vadd.f32 %v1225, %v1433
      %1435 = vmatmul.f32.gmra.mxu0 %v1004
      %v1436 = vpop.f32.mrf.mxu0
      %v1437 = vadd.f32 %v1228, %v1436
      %1438 = vmatmul.f32.gmra.mxu0 %v1006
      %v1439 = vpop.f32.mrf.mxu0
      %v1440 = vadd.f32 %v1231, %v1439
      %1441 = vmatmul.f32.gmra.mxu0 %v1008
      %v1442 = vpop.f32.mrf.mxu0
      %v1443 = vadd.f32 %v1234, %v1442
      %1444 = vmatmul.f32.gmra.mxu0 %v1010
      %v1445 = vpop.f32.mrf.mxu0
      %v1446 = vadd.f32 %v1237, %v1445
      %1447 = vmatmul.f32.gmra.mxu0 %v1012
      %v1448 = vpop.f32.mrf.mxu0
      %v1449 = vadd.f32 %v1240, %v1448
      %1450 = vmatmul.f32.gmra.mxu0 %v1014
      %v1451 = vpop.f32.mrf.mxu0
      %v1452 = vadd.f32 %v1243, %v1451
      %1453 = vmatmul.f32.gmra.mxu0 %v1016
      %v1454 = vpop.f32.mrf.mxu0
      %v1455 = vadd.f32 %v1246, %v1454
      %1456 = vmatmul.f32.gmra.mxu0 %v1018
      %v1457 = vpop.f32.mrf.mxu0
      %v1458 = vadd.f32 %v1249, %v1457
      %1459 = vmatmul.f32.gmra.mxu0 %v1020
      %v1460 = vpop.f32.mrf.mxu0
      %v1461 = vadd.f32 %v1252, %v1460
      %1462 = vmatmul.f32.gmra.mxu0 %v1022
      %v1463 = vpop.f32.mrf.mxu0
      %v1464 = vadd.f32 %v1255, %v1463
      %1465 = vmatmul.f32.gmra.mxu0 %v1024
      %v1466 = vpop.f32.mrf.mxu0
      %v1467 = vadd.f32 %v1258, %v1466
      %1468 = vmatmul.f32.gmra.mxu0 %v1026
      %v1469 = vpop.f32.mrf.mxu0
      %v1470 = vadd.f32 %v1261, %v1469
      %1471 = vmatmul.f32.gmra.mxu0 %v1028
      %v1472 = vpop.f32.mrf.mxu0
      %v1473 = vadd.f32 %v1264, %v1472
      %1474 = vmatmul.f32.gmra.mxu0 %v1030
      %v1475 = vpop.f32.mrf.mxu0
      %v1476 = vadd.f32 %v1267, %v1475
      %1477 = vmatmul.f32.gmra.mxu0 %v1032
      %v1478 = vpop.f32.mrf.mxu0
      %v1479 = vadd.f32 %v1270, %v1478
      %1480 = vmatmul.f32.gmra.mxu0 %v1034
      %v1481 = vpop.f32.mrf.mxu0
      %v1482 = vadd.f32 %v1273, %v1481
      %1483 = vmatmul.f32.gmra.mxu0 %v1036
      %v1484 = vpop.f32.mrf.mxu0
      %v1485 = vadd.f32 %v1276, %v1484
      %1486 = vmatmul.f32.gmra.mxu0 %v1038
      %v1487 = vpop.f32.mrf.mxu0
      %v1488 = vadd.f32 %v1279, %v1487
      %1489 = vmatmul.f32.gmra.mxu0 %v1040
      %v1490 = vpop.f32.mrf.mxu0
      %v1491 = vadd.f32 %v1282, %v1490
      %1492 = vmatmul.f32.gmra.mxu0 %v1042
      %v1493 = vpop.f32.mrf.mxu0
      %v1494 = vadd.f32 %v1285, %v1493
      %1495 = vmatmul.f32.gmra.mxu0 %v1044
      %v1496 = vpop.f32.mrf.mxu0
      %v1497 = vadd.f32 %v1288, %v1496
      %1498 = vdwg.mxu0
      %v1499 = vmul.f32 %v1308, %v1308
      %v1500 = vmul.f32 %v1311, %v1311
      %v1501 = vmul.f32 %v1314, %v1314
      %v1502 = vmul.f32 %v1317, %v1317
      %v1503 = vmul.f32 %v1320, %v1320
      %v1504 = vmul.f32 %v1323, %v1323
      %v1505 = vmul.f32 %v1326, %v1326
      %v1506 = vmul.f32 %v1329, %v1329
      %v1507 = vmul.f32 %v1332, %v1332
      %v1508 = vmul.f32 %v1335, %v1335
      %v1509 = vmul.f32 %v1338, %v1338
      %v1510 = vmul.f32 %v1341, %v1341
      %v1511 = vmul.f32 %v1344, %v1344
      %v1512 = vmul.f32 %v1347, %v1347
      %v1513 = vmul.f32 %v1350, %v1350
      %v1514 = vmul.f32 %v1353, %v1353
      %v1515 = vmul.f32 %v1356, %v1356
      %v1516 = vmul.f32 %v1359, %v1359
      %v1517 = vmul.f32 %v1362, %v1362
      %v1518 = vmul.f32 %v1365, %v1365
      %v1519 = vmul.f32 %v1368, %v1368
      %v1520 = vmul.f32 %v1371, %v1371
      %v1521 = vmul.f32 %v1374, %v1374
      %v1522 = vmul.f32 %v1377, %v1377
      %v1523 = vmul.f32 %v1380, %v1380
      %v1524 = vmul.f32 %v1383, %v1383
      %v1525 = vmul.f32 %v1386, %v1386
      %v1526 = vmul.f32 %v1389, %v1389
      %v1527 = vmul.f32 %v1392, %v1392
      %v1528 = vmul.f32 %v1395, %v1395
      %v1529 = vmul.f32 %v1398, %v1398
      %v1530 = vmul.f32 %v1401, %v1401
      %v1531 = vmul.f32 %v1404, %v1404
      %v1532 = vmul.f32 %v1407, %v1407
      %v1533 = vmul.f32 %v1410, %v1410
      %v1534 = vmul.f32 %v1413, %v1413
      %v1535 = vmul.f32 %v1416, %v1416
      %v1536 = vmul.f32 %v1419, %v1419
      %v1537 = vmul.f32 %v1422, %v1422
      %v1538 = vmul.f32 %v1425, %v1425
      %v1539 = vmul.f32 %v1428, %v1428
      %v1540 = vmul.f32 %v1431, %v1431
      %v1541 = vmul.f32 %v1434, %v1434
      %v1542 = vmul.f32 %v1437, %v1437
      %v1543 = vmul.f32 %v1440, %v1440
      %v1544 = vmul.f32 %v1443, %v1443
      %v1545 = vmul.f32 %v1446, %v1446
      %v1546 = vmul.f32 %v1449, %v1449
      %v1547 = vmul.f32 %v1452, %v1452
      %v1548 = vmul.f32 %v1455, %v1455
      %v1549 = vmul.f32 %v1458, %v1458
      %v1550 = vmul.f32 %v1461, %v1461
      %v1551 = vmul.f32 %v1464, %v1464
      %v1552 = vmul.f32 %v1467, %v1467
      %v1553 = vmul.f32 %v1470, %v1470
      %v1554 = vmul.f32 %v1473, %v1473
      %v1555 = vmul.f32 %v1476, %v1476
      %v1556 = vmul.f32 %v1479, %v1479
      %v1557 = vmul.f32 %v1482, %v1482
      %v1558 = vmul.f32 %v1485, %v1485
      %v1559 = vmul.f32 %v1488, %v1488
      %v1560 = vmul.f32 %v1491, %v1491
      %v1561 = vmul.f32 %v1494, %v1494
      %v1562 = vmul.f32 %v1497, %v1497
      %vm1563 = vcmask 15360
      %v1564 = vsel %vm1563, %v1499, 0.0
      %1565 = vadd.xlane.f32.xlu0 %v1564
      %v1566 = vpop.xlane.xlu0 %1565
      %v1567 = vsel %vm1563, %v1500, 0.0
      %1568 = vadd.xlane.f32.xlu0 %v1567
      %v1569 = vpop.xlane.xlu0 %1568
      %v1570 = vsel %vm1563, %v1501, 0.0
      %1571 = vadd.xlane.f32.xlu0 %v1570
      %v1572 = vpop.xlane.xlu0 %1571
      %v1573 = vsel %vm1563, %v1502, 0.0
      %1574 = vadd.xlane.f32.xlu0 %v1573
      %v1575 = vpop.xlane.xlu0 %1574
      %v1576 = vsel %vm1563, %v1503, 0.0
      %1577 = vadd.xlane.f32.xlu0 %v1576
      %v1578 = vpop.xlane.xlu0 %1577
      %v1579 = vsel %vm1563, %v1504, 0.0
      %1580 = vadd.xlane.f32.xlu0 %v1579
      %v1581 = vpop.xlane.xlu0 %1580
      %v1582 = vsel %vm1563, %v1505, 0.0
      %1583 = vadd.xlane.f32.xlu0 %v1582
      %v1584 = vpop.xlane.xlu0 %1583
      %v1585 = vsel %vm1563, %v1506, 0.0
      %1586 = vadd.xlane.f32.xlu0 %v1585
      %v1587 = vpop.xlane.xlu0 %1586
      %v1588 = vsel %vm1563, %v1507, 0.0
      %1589 = vadd.xlane.f32.xlu0 %v1588
      %v1590 = vpop.xlane.xlu0 %1589
      %v1591 = vsel %vm1563, %v1508, 0.0
      %1592 = vadd.xlane.f32.xlu0 %v1591
      %v1593 = vpop.xlane.xlu0 %1592
      %v1594 = vsel %vm1563, %v1509, 0.0
      %1595 = vadd.xlane.f32.xlu0 %v1594
      %v1596 = vpop.xlane.xlu0 %1595
      %v1597 = vsel %vm1563, %v1510, 0.0
      %1598 = vadd.xlane.f32.xlu0 %v1597
      %v1599 = vpop.xlane.xlu0 %1598
      %v1600 = vsel %vm1563, %v1511, 0.0
      %1601 = vadd.xlane.f32.xlu0 %v1600
      %v1602 = vpop.xlane.xlu0 %1601
      %v1603 = vsel %vm1563, %v1512, 0.0
      %1604 = vadd.xlane.f32.xlu0 %v1603
      %v1605 = vpop.xlane.xlu0 %1604
      %v1606 = vsel %vm1563, %v1513, 0.0
      %1607 = vadd.xlane.f32.xlu0 %v1606
      %v1608 = vpop.xlane.xlu0 %1607
      %v1609 = vsel %vm1563, %v1514, 0.0
      %1610 = vadd.xlane.f32.xlu0 %v1609
      %v1611 = vpop.xlane.xlu0 %1610
      %v1612 = vsel %vm1563, %v1515, 0.0
      %1613 = vadd.xlane.f32.xlu0 %v1612
      %v1614 = vpop.xlane.xlu0 %1613
      %v1615 = vsel %vm1563, %v1516, 0.0
      %1616 = vadd.xlane.f32.xlu0 %v1615
      %v1617 = vpop.xlane.xlu0 %1616
      %v1618 = vsel %vm1563, %v1517, 0.0
      %1619 = vadd.xlane.f32.xlu0 %v1618
      %v1620 = vpop.xlane.xlu0 %1619
      %v1621 = vsel %vm1563, %v1518, 0.0
      %1622 = vadd.xlane.f32.xlu0 %v1621
      %v1623 = vpop.xlane.xlu0 %1622
      %v1624 = vsel %vm1563, %v1519, 0.0
      %1625 = vadd.xlane.f32.xlu0 %v1624
      %v1626 = vpop.xlane.xlu0 %1625
      %v1627 = vsel %vm1563, %v1520, 0.0
      %1628 = vadd.xlane.f32.xlu0 %v1627
      %v1629 = vpop.xlane.xlu0 %1628
      %v1630 = vsel %vm1563, %v1521, 0.0
      %1631 = vadd.xlane.f32.xlu0 %v1630
      %v1632 = vpop.xlane.xlu0 %1631
      %v1633 = vsel %vm1563, %v1522, 0.0
      %1634 = vadd.xlane.f32.xlu0 %v1633
      %v1635 = vpop.xlane.xlu0 %1634
      %v1636 = vsel %vm1563, %v1523, 0.0
      %1637 = vadd.xlane.f32.xlu0 %v1636
      %v1638 = vpop.xlane.xlu0 %1637
      %v1639 = vsel %vm1563, %v1524, 0.0
      %1640 = vadd.xlane.f32.xlu0 %v1639
      %v1641 = vpop.xlane.xlu0 %1640
      %v1642 = vsel %vm1563, %v1525, 0.0
      %1643 = vadd.xlane.f32.xlu0 %v1642
      %v1644 = vpop.xlane.xlu0 %1643
      %v1645 = vsel %vm1563, %v1526, 0.0
      %1646 = vadd.xlane.f32.xlu0 %v1645
      %v1647 = vpop.xlane.xlu0 %1646
      %v1648 = vsel %vm1563, %v1527, 0.0
      %1649 = vadd.xlane.f32.xlu0 %v1648
      %v1650 = vpop.xlane.xlu0 %1649
      %v1651 = vsel %vm1563, %v1528, 0.0
      %1652 = vadd.xlane.f32.xlu0 %v1651
      %v1653 = vpop.xlane.xlu0 %1652
      %v1654 = vsel %vm1563, %v1529, 0.0
      %1655 = vadd.xlane.f32.xlu0 %v1654
      %v1656 = vpop.xlane.xlu0 %1655
      %v1657 = vsel %vm1563, %v1530, 0.0
      %1658 = vadd.xlane.f32.xlu0 %v1657
      %v1659 = vpop.xlane.xlu0 %1658
      %v1660 = vsel %vm1563, %v1531, 0.0
      %1661 = vadd.xlane.f32.xlu0 %v1660
      %v1662 = vpop.xlane.xlu0 %1661
      %v1663 = vsel %vm1563, %v1532, 0.0
      %1664 = vadd.xlane.f32.xlu0 %v1663
      %v1665 = vpop.xlane.xlu0 %1664
      %v1666 = vsel %vm1563, %v1533, 0.0
      %1667 = vadd.xlane.f32.xlu0 %v1666
      %v1668 = vpop.xlane.xlu0 %1667
      %v1669 = vsel %vm1563, %v1534, 0.0
      %1670 = vadd.xlane.f32.xlu0 %v1669
      %v1671 = vpop.xlane.xlu0 %1670
      %v1672 = vsel %vm1563, %v1535, 0.0
      %1673 = vadd.xlane.f32.xlu0 %v1672
      %v1674 = vpop.xlane.xlu0 %1673
      %v1675 = vsel %vm1563, %v1536, 0.0
      %1676 = vadd.xlane.f32.xlu0 %v1675
      %v1677 = vpop.xlane.xlu0 %1676
      %v1678 = vsel %vm1563, %v1537, 0.0
      %1679 = vadd.xlane.f32.xlu0 %v1678
      %v1680 = vpop.xlane.xlu0 %1679
      %v1681 = vsel %vm1563, %v1538, 0.0
      %1682 = vadd.xlane.f32.xlu0 %v1681
      %v1683 = vpop.xlane.xlu0 %1682
      %v1684 = vsel %vm1563, %v1539, 0.0
      %1685 = vadd.xlane.f32.xlu0 %v1684
      %v1686 = vpop.xlane.xlu0 %1685
      %v1687 = vsel %vm1563, %v1540, 0.0
      %1688 = vadd.xlane.f32.xlu0 %v1687
      %v1689 = vpop.xlane.xlu0 %1688
      %v1690 = vsel %vm1563, %v1541, 0.0
      %1691 = vadd.xlane.f32.xlu0 %v1690
      %v1692 = vpop.xlane.xlu0 %1691
      %v1693 = vsel %vm1563, %v1542, 0.0
      %1694 = vadd.xlane.f32.xlu0 %v1693
      %v1695 = vpop.xlane.xlu0 %1694
      %v1696 = vsel %vm1563, %v1543, 0.0
      %1697 = vadd.xlane.f32.xlu0 %v1696
      %v1698 = vpop.xlane.xlu0 %1697
      %v1699 = vsel %vm1563, %v1544, 0.0
      %1700 = vadd.xlane.f32.xlu0 %v1699
      %v1701 = vpop.xlane.xlu0 %1700
      %v1702 = vsel %vm1563, %v1545, 0.0
      %1703 = vadd.xlane.f32.xlu0 %v1702
      %v1704 = vpop.xlane.xlu0 %1703
      %v1705 = vsel %vm1563, %v1546, 0.0
      %1706 = vadd.xlane.f32.xlu0 %v1705
      %v1707 = vpop.xlane.xlu0 %1706
      %v1708 = vsel %vm1563, %v1547, 0.0
      %1709 = vadd.xlane.f32.xlu0 %v1708
      %v1710 = vpop.xlane.xlu0 %1709
      %v1711 = vsel %vm1563, %v1548, 0.0
      %1712 = vadd.xlane.f32.xlu0 %v1711
      %v1713 = vpop.xlane.xlu0 %1712
      %v1714 = vsel %vm1563, %v1549, 0.0
      %1715 = vadd.xlane.f32.xlu0 %v1714
      %v1716 = vpop.xlane.xlu0 %1715
      %v1717 = vsel %vm1563, %v1550, 0.0
      %1718 = vadd.xlane.f32.xlu0 %v1717
      %v1719 = vpop.xlane.xlu0 %1718
      %v1720 = vsel %vm1563, %v1551, 0.0
      %1721 = vadd.xlane.f32.xlu0 %v1720
      %v1722 = vpop.xlane.xlu0 %1721
      %v1723 = vsel %vm1563, %v1552, 0.0
      %1724 = vadd.xlane.f32.xlu0 %v1723
      %v1725 = vpop.xlane.xlu0 %1724
      %v1726 = vsel %vm1563, %v1553, 0.0
      %1727 = vadd.xlane.f32.xlu0 %v1726
      %v1728 = vpop.xlane.xlu0 %1727
      %v1729 = vsel %vm1563, %v1554, 0.0
      %1730 = vadd.xlane.f32.xlu0 %v1729
      %v1731 = vpop.xlane.xlu0 %1730
      %v1732 = vsel %vm1563, %v1555, 0.0
      %1733 = vadd.xlane.f32.xlu0 %v1732
      %v1734 = vpop.xlane.xlu0 %1733
      %v1735 = vsel %vm1563, %v1556, 0.0
      %1736 = vadd.xlane.f32.xlu0 %v1735
      %v1737 = vpop.xlane.xlu0 %1736
      %v1738 = vsel %vm1563, %v1557, 0.0
      %1739 = vadd.xlane.f32.xlu0 %v1738
      %v1740 = vpop.xlane.xlu0 %1739
      %v1741 = vsel %vm1563, %v1558, 0.0
      %1742 = vadd.xlane.f32.xlu0 %v1741
      %v1743 = vpop.xlane.xlu0 %1742
      %v1744 = vsel %vm1563, %v1559, 0.0
      %1745 = vadd.xlane.f32.xlu0 %v1744
      %v1746 = vpop.xlane.xlu0 %1745
      %v1747 = vsel %vm1563, %v1560, 0.0
      %1748 = vadd.xlane.f32.xlu0 %v1747
      %v1749 = vpop.xlane.xlu0 %1748
      %v1750 = vsel %vm1563, %v1561, 0.0
      %1751 = vadd.xlane.f32.xlu0 %v1750
      %v1752 = vpop.xlane.xlu0 %1751
      %v1753 = vsel %vm1563, %v1562, 0.0
      %1754 = vadd.xlane.f32.xlu0 %v1753
      %v1755 = vpop.xlane.xlu0 %1754
      %v1756 = vmax.f32 %v1566, 1e-24
      %v1757 = vmax.f32 %v1569, 1e-24
      %v1758 = vmax.f32 %v1572, 1e-24
      %v1759 = vmax.f32 %v1575, 1e-24
      %v1760 = vmax.f32 %v1578, 1e-24
      %v1761 = vmax.f32 %v1581, 1e-24
      %v1762 = vmax.f32 %v1584, 1e-24
      %v1763 = vmax.f32 %v1587, 1e-24
      %v1764 = vmax.f32 %v1590, 1e-24
      %v1765 = vmax.f32 %v1593, 1e-24
      %v1766 = vmax.f32 %v1596, 1e-24
      %v1767 = vmax.f32 %v1599, 1e-24
      %v1768 = vmax.f32 %v1602, 1e-24
      %v1769 = vmax.f32 %v1605, 1e-24
      %v1770 = vmax.f32 %v1608, 1e-24
      %v1771 = vmax.f32 %v1611, 1e-24
      %v1772 = vmax.f32 %v1614, 1e-24
      %v1773 = vmax.f32 %v1617, 1e-24
      %v1774 = vmax.f32 %v1620, 1e-24
      %v1775 = vmax.f32 %v1623, 1e-24
      %v1776 = vmax.f32 %v1626, 1e-24
      %v1777 = vmax.f32 %v1629, 1e-24
      %v1778 = vmax.f32 %v1632, 1e-24
      %v1779 = vmax.f32 %v1635, 1e-24
      %v1780 = vmax.f32 %v1638, 1e-24
      %v1781 = vmax.f32 %v1641, 1e-24
      %v1782 = vmax.f32 %v1644, 1e-24
      %v1783 = vmax.f32 %v1647, 1e-24
      %v1784 = vmax.f32 %v1650, 1e-24
      %v1785 = vmax.f32 %v1653, 1e-24
      %v1786 = vmax.f32 %v1656, 1e-24
      %v1787 = vmax.f32 %v1659, 1e-24
      %v1788 = vmax.f32 %v1662, 1e-24
      %v1789 = vmax.f32 %v1665, 1e-24
      %v1790 = vmax.f32 %v1668, 1e-24
      %v1791 = vmax.f32 %v1671, 1e-24
      %v1792 = vmax.f32 %v1674, 1e-24
      %v1793 = vmax.f32 %v1677, 1e-24
      %v1794 = vmax.f32 %v1680, 1e-24
      %v1795 = vmax.f32 %v1683, 1e-24
      %v1796 = vmax.f32 %v1686, 1e-24
      %v1797 = vmax.f32 %v1689, 1e-24
      %v1798 = vmax.f32 %v1692, 1e-24
      %v1799 = vmax.f32 %v1695, 1e-24
      %v1800 = vmax.f32 %v1698, 1e-24
      %v1801 = vmax.f32 %v1701, 1e-24
      %v1802 = vmax.f32 %v1704, 1e-24
      %v1803 = vmax.f32 %v1707, 1e-24
      %v1804 = vmax.f32 %v1710, 1e-24
      %v1805 = vmax.f32 %v1713, 1e-24
      %v1806 = vmax.f32 %v1716, 1e-24
      %v1807 = vmax.f32 %v1719, 1e-24
      %v1808 = vmax.f32 %v1722, 1e-24
      %v1809 = vmax.f32 %v1725, 1e-24
      %v1810 = vmax.f32 %v1728, 1e-24
      %v1811 = vmax.f32 %v1731, 1e-24
      %v1812 = vmax.f32 %v1734, 1e-24
      %v1813 = vmax.f32 %v1737, 1e-24
      %v1814 = vmax.f32 %v1740, 1e-24
      %v1815 = vmax.f32 %v1743, 1e-24
      %v1816 = vmax.f32 %v1746, 1e-24
      %v1817 = vmax.f32 %v1749, 1e-24
      %v1818 = vmax.f32 %v1752, 1e-24
      %v1819 = vmax.f32 %v1755, 1e-24
      %v1820 = vrsqrt.pop %v1756
      %v1821 = vmul.f32 %v1820, %v1756
      %v1822 = vmul.f32 %v1821, %v1820
      %v1823 = vmul.f32 0.5, %v1822
      %v1824 = vsub.f32 1.5, %v1823
      %v1825 = vmul.f32 %v1820, %v1824
      %vm1826 = vweird.f32 %v1756
      %vm1827 = vweird.f32 %v1820
      %vm1828 = vmor %vm1826, %vm1827
      %v1829 = vsel %vm1828, %v1820, %v1825
      %v1830 = vrsqrt.pop %v1757
      %v1831 = vmul.f32 %v1830, %v1757
      %v1832 = vmul.f32 %v1831, %v1830
      %v1833 = vmul.f32 0.5, %v1832
      %v1834 = vsub.f32 1.5, %v1833
      %v1835 = vmul.f32 %v1830, %v1834
      %vm1836 = vweird.f32 %v1757
      %vm1837 = vweird.f32 %v1830
      %vm1838 = vmor %vm1836, %vm1837
      %v1839 = vsel %vm1838, %v1830, %v1835
      %v1840 = vrsqrt.pop %v1758
      %v1841 = vmul.f32 %v1840, %v1758
      %v1842 = vmul.f32 %v1841, %v1840
      %v1843 = vmul.f32 0.5, %v1842
      %v1844 = vsub.f32 1.5, %v1843
      %v1845 = vmul.f32 %v1840, %v1844
      %vm1846 = vweird.f32 %v1758
      %vm1847 = vweird.f32 %v1840
      %vm1848 = vmor %vm1846, %vm1847
      %v1849 = vsel %vm1848, %v1840, %v1845
      %v1850 = vrsqrt.pop %v1759
      %v1851 = vmul.f32 %v1850, %v1759
      %v1852 = vmul.f32 %v1851, %v1850
      %v1853 = vmul.f32 0.5, %v1852
      %v1854 = vsub.f32 1.5, %v1853
      %v1855 = vmul.f32 %v1850, %v1854
      %vm1856 = vweird.f32 %v1759
      %vm1857 = vweird.f32 %v1850
      %vm1858 = vmor %vm1856, %vm1857
      %v1859 = vsel %vm1858, %v1850, %v1855
      %v1860 = vrsqrt.pop %v1760
      %v1861 = vmul.f32 %v1860, %v1760
      %v1862 = vmul.f32 %v1861, %v1860
      %v1863 = vmul.f32 0.5, %v1862
      %v1864 = vsub.f32 1.5, %v1863
      %v1865 = vmul.f32 %v1860, %v1864
      %vm1866 = vweird.f32 %v1760
      %vm1867 = vweird.f32 %v1860
      %vm1868 = vmor %vm1866, %vm1867
      %v1869 = vsel %vm1868, %v1860, %v1865
      %v1870 = vrsqrt.pop %v1761
      %v1871 = vmul.f32 %v1870, %v1761
      %v1872 = vmul.f32 %v1871, %v1870
      %v1873 = vmul.f32 0.5, %v1872
      %v1874 = vsub.f32 1.5, %v1873
      %v1875 = vmul.f32 %v1870, %v1874
      %vm1876 = vweird.f32 %v1761
      %vm1877 = vweird.f32 %v1870
      %vm1878 = vmor %vm1876, %vm1877
      %v1879 = vsel %vm1878, %v1870, %v1875
      %v1880 = vrsqrt.pop %v1762
      %v1881 = vmul.f32 %v1880, %v1762
      %v1882 = vmul.f32 %v1881, %v1880
      %v1883 = vmul.f32 0.5, %v1882
      %v1884 = vsub.f32 1.5, %v1883
      %v1885 = vmul.f32 %v1880, %v1884
      %vm1886 = vweird.f32 %v1762
      %vm1887 = vweird.f32 %v1880
      %vm1888 = vmor %vm1886, %vm1887
      %v1889 = vsel %vm1888, %v1880, %v1885
      %v1890 = vrsqrt.pop %v1763
      %v1891 = vmul.f32 %v1890, %v1763
      %v1892 = vmul.f32 %v1891, %v1890
      %v1893 = vmul.f32 0.5, %v1892
      %v1894 = vsub.f32 1.5, %v1893
      %v1895 = vmul.f32 %v1890, %v1894
      %vm1896 = vweird.f32 %v1763
      %vm1897 = vweird.f32 %v1890
      %vm1898 = vmor %vm1896, %vm1897
      %v1899 = vsel %vm1898, %v1890, %v1895
      %v1900 = vrsqrt.pop %v1764
      %v1901 = vmul.f32 %v1900, %v1764
      %v1902 = vmul.f32 %v1901, %v1900
      %v1903 = vmul.f32 0.5, %v1902
      %v1904 = vsub.f32 1.5, %v1903
      %v1905 = vmul.f32 %v1900, %v1904
      %vm1906 = vweird.f32 %v1764
      %vm1907 = vweird.f32 %v1900
      %vm1908 = vmor %vm1906, %vm1907
      %v1909 = vsel %vm1908, %v1900, %v1905
      %v1910 = vrsqrt.pop %v1765
      %v1911 = vmul.f32 %v1910, %v1765
      %v1912 = vmul.f32 %v1911, %v1910
      %v1913 = vmul.f32 0.5, %v1912
      %v1914 = vsub.f32 1.5, %v1913
      %v1915 = vmul.f32 %v1910, %v1914
      %vm1916 = vweird.f32 %v1765
      %vm1917 = vweird.f32 %v1910
      %vm1918 = vmor %vm1916, %vm1917
      %v1919 = vsel %vm1918, %v1910, %v1915
      %v1920 = vrsqrt.pop %v1766
      %v1921 = vmul.f32 %v1920, %v1766
      %v1922 = vmul.f32 %v1921, %v1920
      %v1923 = vmul.f32 0.5, %v1922
      %v1924 = vsub.f32 1.5, %v1923
      %v1925 = vmul.f32 %v1920, %v1924
      %vm1926 = vweird.f32 %v1766
      %vm1927 = vweird.f32 %v1920
      %vm1928 = vmor %vm1926, %vm1927
      %v1929 = vsel %vm1928, %v1920, %v1925
      %v1930 = vrsqrt.pop %v1767
      %v1931 = vmul.f32 %v1930, %v1767
      %v1932 = vmul.f32 %v1931, %v1930
      %v1933 = vmul.f32 0.5, %v1932
      %v1934 = vsub.f32 1.5, %v1933
      %v1935 = vmul.f32 %v1930, %v1934
      %vm1936 = vweird.f32 %v1767
      %vm1937 = vweird.f32 %v1930
      %vm1938 = vmor %vm1936, %vm1937
      %v1939 = vsel %vm1938, %v1930, %v1935
      %v1940 = vrsqrt.pop %v1768
      %v1941 = vmul.f32 %v1940, %v1768
      %v1942 = vmul.f32 %v1941, %v1940
      %v1943 = vmul.f32 0.5, %v1942
      %v1944 = vsub.f32 1.5, %v1943
      %v1945 = vmul.f32 %v1940, %v1944
      %vm1946 = vweird.f32 %v1768
      %vm1947 = vweird.f32 %v1940
      %vm1948 = vmor %vm1946, %vm1947
      %v1949 = vsel %vm1948, %v1940, %v1945
      %v1950 = vrsqrt.pop %v1769
      %v1951 = vmul.f32 %v1950, %v1769
      %v1952 = vmul.f32 %v1951, %v1950
      %v1953 = vmul.f32 0.5, %v1952
      %v1954 = vsub.f32 1.5, %v1953
      %v1955 = vmul.f32 %v1950, %v1954
      %vm1956 = vweird.f32 %v1769
      %vm1957 = vweird.f32 %v1950
      %vm1958 = vmor %vm1956, %vm1957
      %v1959 = vsel %vm1958, %v1950, %v1955
      %v1960 = vrsqrt.pop %v1770
      %v1961 = vmul.f32 %v1960, %v1770
      %v1962 = vmul.f32 %v1961, %v1960
      %v1963 = vmul.f32 0.5, %v1962
      %v1964 = vsub.f32 1.5, %v1963
      %v1965 = vmul.f32 %v1960, %v1964
      %vm1966 = vweird.f32 %v1770
      %vm1967 = vweird.f32 %v1960
      %vm1968 = vmor %vm1966, %vm1967
      %v1969 = vsel %vm1968, %v1960, %v1965
      %v1970 = vrsqrt.pop %v1771
      %v1971 = vmul.f32 %v1970, %v1771
      %v1972 = vmul.f32 %v1971, %v1970
      %v1973 = vmul.f32 0.5, %v1972
      %v1974 = vsub.f32 1.5, %v1973
      %v1975 = vmul.f32 %v1970, %v1974
      %vm1976 = vweird.f32 %v1771
      %vm1977 = vweird.f32 %v1970
      %vm1978 = vmor %vm1976, %vm1977
      %v1979 = vsel %vm1978, %v1970, %v1975
      %v1980 = vrsqrt.pop %v1772
      %v1981 = vmul.f32 %v1980, %v1772
      %v1982 = vmul.f32 %v1981, %v1980
      %v1983 = vmul.f32 0.5, %v1982
      %v1984 = vsub.f32 1.5, %v1983
      %v1985 = vmul.f32 %v1980, %v1984
      %vm1986 = vweird.f32 %v1772
      %vm1987 = vweird.f32 %v1980
      %vm1988 = vmor %vm1986, %vm1987
      %v1989 = vsel %vm1988, %v1980, %v1985
      %v1990 = vrsqrt.pop %v1773
      %v1991 = vmul.f32 %v1990, %v1773
      %v1992 = vmul.f32 %v1991, %v1990
      %v1993 = vmul.f32 0.5, %v1992
      %v1994 = vsub.f32 1.5, %v1993
      %v1995 = vmul.f32 %v1990, %v1994
      %vm1996 = vweird.f32 %v1773
      %vm1997 = vweird.f32 %v1990
      %vm1998 = vmor %vm1996, %vm1997
      %v1999 = vsel %vm1998, %v1990, %v1995
      %v2000 = vrsqrt.pop %v1774
      %v2001 = vmul.f32 %v2000, %v1774
      %v2002 = vmul.f32 %v2001, %v2000
      %v2003 = vmul.f32 0.5, %v2002
      %v2004 = vsub.f32 1.5, %v2003
      %v2005 = vmul.f32 %v2000, %v2004
      %vm2006 = vweird.f32 %v1774
      %vm2007 = vweird.f32 %v2000
      %vm2008 = vmor %vm2006, %vm2007
      %v2009 = vsel %vm2008, %v2000, %v2005
      %v2010 = vrsqrt.pop %v1775
      %v2011 = vmul.f32 %v2010, %v1775
      %v2012 = vmul.f32 %v2011, %v2010
      %v2013 = vmul.f32 0.5, %v2012
      %v2014 = vsub.f32 1.5, %v2013
      %v2015 = vmul.f32 %v2010, %v2014
      %vm2016 = vweird.f32 %v1775
      %vm2017 = vweird.f32 %v2010
      %vm2018 = vmor %vm2016, %vm2017
      %v2019 = vsel %vm2018, %v2010, %v2015
      %v2020 = vrsqrt.pop %v1776
      %v2021 = vmul.f32 %v2020, %v1776
      %v2022 = vmul.f32 %v2021, %v2020
      %v2023 = vmul.f32 0.5, %v2022
      %v2024 = vsub.f32 1.5, %v2023
      %v2025 = vmul.f32 %v2020, %v2024
      %vm2026 = vweird.f32 %v1776
      %vm2027 = vweird.f32 %v2020
      %vm2028 = vmor %vm2026, %vm2027
      %v2029 = vsel %vm2028, %v2020, %v2025
      %v2030 = vrsqrt.pop %v1777
      %v2031 = vmul.f32 %v2030, %v1777
      %v2032 = vmul.f32 %v2031, %v2030
      %v2033 = vmul.f32 0.5, %v2032
      %v2034 = vsub.f32 1.5, %v2033
      %v2035 = vmul.f32 %v2030, %v2034
      %vm2036 = vweird.f32 %v1777
      %vm2037 = vweird.f32 %v2030
      %vm2038 = vmor %vm2036, %vm2037
      %v2039 = vsel %vm2038, %v2030, %v2035
      %v2040 = vrsqrt.pop %v1778
      %v2041 = vmul.f32 %v2040, %v1778
      %v2042 = vmul.f32 %v2041, %v2040
      %v2043 = vmul.f32 0.5, %v2042
      %v2044 = vsub.f32 1.5, %v2043
      %v2045 = vmul.f32 %v2040, %v2044
      %vm2046 = vweird.f32 %v1778
      %vm2047 = vweird.f32 %v2040
      %vm2048 = vmor %vm2046, %vm2047
      %v2049 = vsel %vm2048, %v2040, %v2045
      %v2050 = vrsqrt.pop %v1779
      %v2051 = vmul.f32 %v2050, %v1779
      %v2052 = vmul.f32 %v2051, %v2050
      %v2053 = vmul.f32 0.5, %v2052
      %v2054 = vsub.f32 1.5, %v2053
      %v2055 = vmul.f32 %v2050, %v2054
      %vm2056 = vweird.f32 %v1779
      %vm2057 = vweird.f32 %v2050
      %vm2058 = vmor %vm2056, %vm2057
      %v2059 = vsel %vm2058, %v2050, %v2055
      %v2060 = vrsqrt.pop %v1780
      %v2061 = vmul.f32 %v2060, %v1780
      %v2062 = vmul.f32 %v2061, %v2060
      %v2063 = vmul.f32 0.5, %v2062
      %v2064 = vsub.f32 1.5, %v2063
      %v2065 = vmul.f32 %v2060, %v2064
      %vm2066 = vweird.f32 %v1780
      %vm2067 = vweird.f32 %v2060
      %vm2068 = vmor %vm2066, %vm2067
      %v2069 = vsel %vm2068, %v2060, %v2065
      %v2070 = vrsqrt.pop %v1781
      %v2071 = vmul.f32 %v2070, %v1781
      %v2072 = vmul.f32 %v2071, %v2070
      %v2073 = vmul.f32 0.5, %v2072
      %v2074 = vsub.f32 1.5, %v2073
      %v2075 = vmul.f32 %v2070, %v2074
      %vm2076 = vweird.f32 %v1781
      %vm2077 = vweird.f32 %v2070
      %vm2078 = vmor %vm2076, %vm2077
      %v2079 = vsel %vm2078, %v2070, %v2075
      %v2080 = vrsqrt.pop %v1782
      %v2081 = vmul.f32 %v2080, %v1782
      %v2082 = vmul.f32 %v2081, %v2080
      %v2083 = vmul.f32 0.5, %v2082
      %v2084 = vsub.f32 1.5, %v2083
      %v2085 = vmul.f32 %v2080, %v2084
      %vm2086 = vweird.f32 %v1782
      %vm2087 = vweird.f32 %v2080
      %vm2088 = vmor %vm2086, %vm2087
      %v2089 = vsel %vm2088, %v2080, %v2085
      %v2090 = vrsqrt.pop %v1783
      %v2091 = vmul.f32 %v2090, %v1783
      %v2092 = vmul.f32 %v2091, %v2090
      %v2093 = vmul.f32 0.5, %v2092
      %v2094 = vsub.f32 1.5, %v2093
      %v2095 = vmul.f32 %v2090, %v2094
      %vm2096 = vweird.f32 %v1783
      %vm2097 = vweird.f32 %v2090
      %vm2098 = vmor %vm2096, %vm2097
      %v2099 = vsel %vm2098, %v2090, %v2095
      %v2100 = vrsqrt.pop %v1784
      %v2101 = vmul.f32 %v2100, %v1784
      %v2102 = vmul.f32 %v2101, %v2100
      %v2103 = vmul.f32 0.5, %v2102
      %v2104 = vsub.f32 1.5, %v2103
      %v2105 = vmul.f32 %v2100, %v2104
      %vm2106 = vweird.f32 %v1784
      %vm2107 = vweird.f32 %v2100
      %vm2108 = vmor %vm2106, %vm2107
      %v2109 = vsel %vm2108, %v2100, %v2105
      %v2110 = vrsqrt.pop %v1785
      %v2111 = vmul.f32 %v2110, %v1785
      %v2112 = vmul.f32 %v2111, %v2110
      %v2113 = vmul.f32 0.5, %v2112
      %v2114 = vsub.f32 1.5, %v2113
      %v2115 = vmul.f32 %v2110, %v2114
      %vm2116 = vweird.f32 %v1785
      %vm2117 = vweird.f32 %v2110
      %vm2118 = vmor %vm2116, %vm2117
      %v2119 = vsel %vm2118, %v2110, %v2115
      %v2120 = vrsqrt.pop %v1786
      %v2121 = vmul.f32 %v2120, %v1786
      %v2122 = vmul.f32 %v2121, %v2120
      %v2123 = vmul.f32 0.5, %v2122
      %v2124 = vsub.f32 1.5, %v2123
      %v2125 = vmul.f32 %v2120, %v2124
      %vm2126 = vweird.f32 %v1786
      %vm2127 = vweird.f32 %v2120
      %vm2128 = vmor %vm2126, %vm2127
      %v2129 = vsel %vm2128, %v2120, %v2125
      %v2130 = vrsqrt.pop %v1787
      %v2131 = vmul.f32 %v2130, %v1787
      %v2132 = vmul.f32 %v2131, %v2130
      %v2133 = vmul.f32 0.5, %v2132
      %v2134 = vsub.f32 1.5, %v2133
      %v2135 = vmul.f32 %v2130, %v2134
      %vm2136 = vweird.f32 %v1787
      %vm2137 = vweird.f32 %v2130
      %vm2138 = vmor %vm2136, %vm2137
      %v2139 = vsel %vm2138, %v2130, %v2135
      %v2140 = vrsqrt.pop %v1788
      %v2141 = vmul.f32 %v2140, %v1788
      %v2142 = vmul.f32 %v2141, %v2140
      %v2143 = vmul.f32 0.5, %v2142
      %v2144 = vsub.f32 1.5, %v2143
      %v2145 = vmul.f32 %v2140, %v2144
      %vm2146 = vweird.f32 %v1788
      %vm2147 = vweird.f32 %v2140
      %vm2148 = vmor %vm2146, %vm2147
      %v2149 = vsel %vm2148, %v2140, %v2145
      %v2150 = vrsqrt.pop %v1789
      %v2151 = vmul.f32 %v2150, %v1789
      %v2152 = vmul.f32 %v2151, %v2150
      %v2153 = vmul.f32 0.5, %v2152
      %v2154 = vsub.f32 1.5, %v2153
      %v2155 = vmul.f32 %v2150, %v2154
      %vm2156 = vweird.f32 %v1789
      %vm2157 = vweird.f32 %v2150
      %vm2158 = vmor %vm2156, %vm2157
      %v2159 = vsel %vm2158, %v2150, %v2155
      %v2160 = vrsqrt.pop %v1790
      %v2161 = vmul.f32 %v2160, %v1790
      %v2162 = vmul.f32 %v2161, %v2160
      %v2163 = vmul.f32 0.5, %v2162
      %v2164 = vsub.f32 1.5, %v2163
      %v2165 = vmul.f32 %v2160, %v2164
      %vm2166 = vweird.f32 %v1790
      %vm2167 = vweird.f32 %v2160
      %vm2168 = vmor %vm2166, %vm2167
      %v2169 = vsel %vm2168, %v2160, %v2165
      %v2170 = vrsqrt.pop %v1791
      %v2171 = vmul.f32 %v2170, %v1791
      %v2172 = vmul.f32 %v2171, %v2170
      %v2173 = vmul.f32 0.5, %v2172
      %v2174 = vsub.f32 1.5, %v2173
      %v2175 = vmul.f32 %v2170, %v2174
      %vm2176 = vweird.f32 %v1791
      %vm2177 = vweird.f32 %v2170
      %vm2178 = vmor %vm2176, %vm2177
      %v2179 = vsel %vm2178, %v2170, %v2175
      %v2180 = vrsqrt.pop %v1792
      %v2181 = vmul.f32 %v2180, %v1792
      %v2182 = vmul.f32 %v2181, %v2180
      %v2183 = vmul.f32 0.5, %v2182
      %v2184 = vsub.f32 1.5, %v2183
      %v2185 = vmul.f32 %v2180, %v2184
      %vm2186 = vweird.f32 %v1792
      %vm2187 = vweird.f32 %v2180
      %vm2188 = vmor %vm2186, %vm2187
      %v2189 = vsel %vm2188, %v2180, %v2185
      %v2190 = vrsqrt.pop %v1793
      %v2191 = vmul.f32 %v2190, %v1793
      %v2192 = vmul.f32 %v2191, %v2190
      %v2193 = vmul.f32 0.5, %v2192
      %v2194 = vsub.f32 1.5, %v2193
      %v2195 = vmul.f32 %v2190, %v2194
      %vm2196 = vweird.f32 %v1793
      %vm2197 = vweird.f32 %v2190
      %vm2198 = vmor %vm2196, %vm2197
      %v2199 = vsel %vm2198, %v2190, %v2195
      %v2200 = vrsqrt.pop %v1794
      %v2201 = vmul.f32 %v2200, %v1794
      %v2202 = vmul.f32 %v2201, %v2200
      %v2203 = vmul.f32 0.5, %v2202
      %v2204 = vsub.f32 1.5, %v2203
      %v2205 = vmul.f32 %v2200, %v2204
      %vm2206 = vweird.f32 %v1794
      %vm2207 = vweird.f32 %v2200
      %vm2208 = vmor %vm2206, %vm2207
      %v2209 = vsel %vm2208, %v2200, %v2205
      %v2210 = vrsqrt.pop %v1795
      %v2211 = vmul.f32 %v2210, %v1795
      %v2212 = vmul.f32 %v2211, %v2210
      %v2213 = vmul.f32 0.5, %v2212
      %v2214 = vsub.f32 1.5, %v2213
      %v2215 = vmul.f32 %v2210, %v2214
      %vm2216 = vweird.f32 %v1795
      %vm2217 = vweird.f32 %v2210
      %vm2218 = vmor %vm2216, %vm2217
      %v2219 = vsel %vm2218, %v2210, %v2215
      %v2220 = vrsqrt.pop %v1796
      %v2221 = vmul.f32 %v2220, %v1796
      %v2222 = vmul.f32 %v2221, %v2220
      %v2223 = vmul.f32 0.5, %v2222
      %v2224 = vsub.f32 1.5, %v2223
      %v2225 = vmul.f32 %v2220, %v2224
      %vm2226 = vweird.f32 %v1796
      %vm2227 = vweird.f32 %v2220
      %vm2228 = vmor %vm2226, %vm2227
      %v2229 = vsel %vm2228, %v2220, %v2225
      %v2230 = vrsqrt.pop %v1797
      %v2231 = vmul.f32 %v2230, %v1797
      %v2232 = vmul.f32 %v2231, %v2230
      %v2233 = vmul.f32 0.5, %v2232
      %v2234 = vsub.f32 1.5, %v2233
      %v2235 = vmul.f32 %v2230, %v2234
      %vm2236 = vweird.f32 %v1797
      %vm2237 = vweird.f32 %v2230
      %vm2238 = vmor %vm2236, %vm2237
      %v2239 = vsel %vm2238, %v2230, %v2235
      %v2240 = vrsqrt.pop %v1798
      %v2241 = vmul.f32 %v2240, %v1798
      %v2242 = vmul.f32 %v2241, %v2240
      %v2243 = vmul.f32 0.5, %v2242
      %v2244 = vsub.f32 1.5, %v2243
      %v2245 = vmul.f32 %v2240, %v2244
      %vm2246 = vweird.f32 %v1798
      %vm2247 = vweird.f32 %v2240
      %vm2248 = vmor %vm2246, %vm2247
      %v2249 = vsel %vm2248, %v2240, %v2245
      %v2250 = vrsqrt.pop %v1799
      %v2251 = vmul.f32 %v2250, %v1799
      %v2252 = vmul.f32 %v2251, %v2250
      %v2253 = vmul.f32 0.5, %v2252
      %v2254 = vsub.f32 1.5, %v2253
      %v2255 = vmul.f32 %v2250, %v2254
      %vm2256 = vweird.f32 %v1799
      %vm2257 = vweird.f32 %v2250
      %vm2258 = vmor %vm2256, %vm2257
      %v2259 = vsel %vm2258, %v2250, %v2255
      %v2260 = vrsqrt.pop %v1800
      %v2261 = vmul.f32 %v2260, %v1800
      %v2262 = vmul.f32 %v2261, %v2260
      %v2263 = vmul.f32 0.5, %v2262
      %v2264 = vsub.f32 1.5, %v2263
      %v2265 = vmul.f32 %v2260, %v2264
      %vm2266 = vweird.f32 %v1800
      %vm2267 = vweird.f32 %v2260
      %vm2268 = vmor %vm2266, %vm2267
      %v2269 = vsel %vm2268, %v2260, %v2265
      %v2270 = vrsqrt.pop %v1801
      %v2271 = vmul.f32 %v2270, %v1801
      %v2272 = vmul.f32 %v2271, %v2270
      %v2273 = vmul.f32 0.5, %v2272
      %v2274 = vsub.f32 1.5, %v2273
      %v2275 = vmul.f32 %v2270, %v2274
      %vm2276 = vweird.f32 %v1801
      %vm2277 = vweird.f32 %v2270
      %vm2278 = vmor %vm2276, %vm2277
      %v2279 = vsel %vm2278, %v2270, %v2275
      %v2280 = vrsqrt.pop %v1802
      %v2281 = vmul.f32 %v2280, %v1802
      %v2282 = vmul.f32 %v2281, %v2280
      %v2283 = vmul.f32 0.5, %v2282
      %v2284 = vsub.f32 1.5, %v2283
      %v2285 = vmul.f32 %v2280, %v2284
      %vm2286 = vweird.f32 %v1802
      %vm2287 = vweird.f32 %v2280
      %vm2288 = vmor %vm2286, %vm2287
      %v2289 = vsel %vm2288, %v2280, %v2285
      %v2290 = vrsqrt.pop %v1803
      %v2291 = vmul.f32 %v2290, %v1803
      %v2292 = vmul.f32 %v2291, %v2290
      %v2293 = vmul.f32 0.5, %v2292
      %v2294 = vsub.f32 1.5, %v2293
      %v2295 = vmul.f32 %v2290, %v2294
      %vm2296 = vweird.f32 %v1803
      %vm2297 = vweird.f32 %v2290
      %vm2298 = vmor %vm2296, %vm2297
      %v2299 = vsel %vm2298, %v2290, %v2295
      %v2300 = vrsqrt.pop %v1804
      %v2301 = vmul.f32 %v2300, %v1804
      %v2302 = vmul.f32 %v2301, %v2300
      %v2303 = vmul.f32 0.5, %v2302
      %v2304 = vsub.f32 1.5, %v2303
      %v2305 = vmul.f32 %v2300, %v2304
      %vm2306 = vweird.f32 %v1804
      %vm2307 = vweird.f32 %v2300
      %vm2308 = vmor %vm2306, %vm2307
      %v2309 = vsel %vm2308, %v2300, %v2305
      %v2310 = vrsqrt.pop %v1805
      %v2311 = vmul.f32 %v2310, %v1805
      %v2312 = vmul.f32 %v2311, %v2310
      %v2313 = vmul.f32 0.5, %v2312
      %v2314 = vsub.f32 1.5, %v2313
      %v2315 = vmul.f32 %v2310, %v2314
      %vm2316 = vweird.f32 %v1805
      %vm2317 = vweird.f32 %v2310
      %vm2318 = vmor %vm2316, %vm2317
      %v2319 = vsel %vm2318, %v2310, %v2315
      %v2320 = vrsqrt.pop %v1806
      %v2321 = vmul.f32 %v2320, %v1806
      %v2322 = vmul.f32 %v2321, %v2320
      %v2323 = vmul.f32 0.5, %v2322
      %v2324 = vsub.f32 1.5, %v2323
      %v2325 = vmul.f32 %v2320, %v2324
      %vm2326 = vweird.f32 %v1806
      %vm2327 = vweird.f32 %v2320
      %vm2328 = vmor %vm2326, %vm2327
      %v2329 = vsel %vm2328, %v2320, %v2325
      %v2330 = vrsqrt.pop %v1807
      %v2331 = vmul.f32 %v2330, %v1807
      %v2332 = vmul.f32 %v2331, %v2330
      %v2333 = vmul.f32 0.5, %v2332
      %v2334 = vsub.f32 1.5, %v2333
      %v2335 = vmul.f32 %v2330, %v2334
      %vm2336 = vweird.f32 %v1807
      %vm2337 = vweird.f32 %v2330
      %vm2338 = vmor %vm2336, %vm2337
      %v2339 = vsel %vm2338, %v2330, %v2335
      %v2340 = vrsqrt.pop %v1808
      %v2341 = vmul.f32 %v2340, %v1808
      %v2342 = vmul.f32 %v2341, %v2340
      %v2343 = vmul.f32 0.5, %v2342
      %v2344 = vsub.f32 1.5, %v2343
      %v2345 = vmul.f32 %v2340, %v2344
      %vm2346 = vweird.f32 %v1808
      %vm2347 = vweird.f32 %v2340
      %vm2348 = vmor %vm2346, %vm2347
      %v2349 = vsel %vm2348, %v2340, %v2345
      %v2350 = vrsqrt.pop %v1809
      %v2351 = vmul.f32 %v2350, %v1809
      %v2352 = vmul.f32 %v2351, %v2350
      %v2353 = vmul.f32 0.5, %v2352
      %v2354 = vsub.f32 1.5, %v2353
      %v2355 = vmul.f32 %v2350, %v2354
      %vm2356 = vweird.f32 %v1809
      %vm2357 = vweird.f32 %v2350
      %vm2358 = vmor %vm2356, %vm2357
      %v2359 = vsel %vm2358, %v2350, %v2355
      %v2360 = vrsqrt.pop %v1810
      %v2361 = vmul.f32 %v2360, %v1810
      %v2362 = vmul.f32 %v2361, %v2360
      %v2363 = vmul.f32 0.5, %v2362
      %v2364 = vsub.f32 1.5, %v2363
      %v2365 = vmul.f32 %v2360, %v2364
      %vm2366 = vweird.f32 %v1810
      %vm2367 = vweird.f32 %v2360
      %vm2368 = vmor %vm2366, %vm2367
      %v2369 = vsel %vm2368, %v2360, %v2365
      %v2370 = vrsqrt.pop %v1811
      %v2371 = vmul.f32 %v2370, %v1811
      %v2372 = vmul.f32 %v2371, %v2370
      %v2373 = vmul.f32 0.5, %v2372
      %v2374 = vsub.f32 1.5, %v2373
      %v2375 = vmul.f32 %v2370, %v2374
      %vm2376 = vweird.f32 %v1811
      %vm2377 = vweird.f32 %v2370
      %vm2378 = vmor %vm2376, %vm2377
      %v2379 = vsel %vm2378, %v2370, %v2375
      %v2380 = vrsqrt.pop %v1812
      %v2381 = vmul.f32 %v2380, %v1812
      %v2382 = vmul.f32 %v2381, %v2380
      %v2383 = vmul.f32 0.5, %v2382
      %v2384 = vsub.f32 1.5, %v2383
      %v2385 = vmul.f32 %v2380, %v2384
      %vm2386 = vweird.f32 %v1812
      %vm2387 = vweird.f32 %v2380
      %vm2388 = vmor %vm2386, %vm2387
      %v2389 = vsel %vm2388, %v2380, %v2385
      %v2390 = vrsqrt.pop %v1813
      %v2391 = vmul.f32 %v2390, %v1813
      %v2392 = vmul.f32 %v2391, %v2390
      %v2393 = vmul.f32 0.5, %v2392
      %v2394 = vsub.f32 1.5, %v2393
      %v2395 = vmul.f32 %v2390, %v2394
      %vm2396 = vweird.f32 %v1813
      %vm2397 = vweird.f32 %v2390
      %vm2398 = vmor %vm2396, %vm2397
      %v2399 = vsel %vm2398, %v2390, %v2395
      %v2400 = vrsqrt.pop %v1814
      %v2401 = vmul.f32 %v2400, %v1814
      %v2402 = vmul.f32 %v2401, %v2400
      %v2403 = vmul.f32 0.5, %v2402
      %v2404 = vsub.f32 1.5, %v2403
      %v2405 = vmul.f32 %v2400, %v2404
      %vm2406 = vweird.f32 %v1814
      %vm2407 = vweird.f32 %v2400
      %vm2408 = vmor %vm2406, %vm2407
      %v2409 = vsel %vm2408, %v2400, %v2405
      %v2410 = vrsqrt.pop %v1815
      %v2411 = vmul.f32 %v2410, %v1815
      %v2412 = vmul.f32 %v2411, %v2410
      %v2413 = vmul.f32 0.5, %v2412
      %v2414 = vsub.f32 1.5, %v2413
      %v2415 = vmul.f32 %v2410, %v2414
      %vm2416 = vweird.f32 %v1815
      %vm2417 = vweird.f32 %v2410
      %vm2418 = vmor %vm2416, %vm2417
      %v2419 = vsel %vm2418, %v2410, %v2415
      %v2420 = vrsqrt.pop %v1816
      %v2421 = vmul.f32 %v2420, %v1816
      %v2422 = vmul.f32 %v2421, %v2420
      %v2423 = vmul.f32 0.5, %v2422
      %v2424 = vsub.f32 1.5, %v2423
      %v2425 = vmul.f32 %v2420, %v2424
      %vm2426 = vweird.f32 %v1816
      %vm2427 = vweird.f32 %v2420
      %vm2428 = vmor %vm2426, %vm2427
      %v2429 = vsel %vm2428, %v2420, %v2425
      %v2430 = vrsqrt.pop %v1817
      %v2431 = vmul.f32 %v2430, %v1817
      %v2432 = vmul.f32 %v2431, %v2430
      %v2433 = vmul.f32 0.5, %v2432
      %v2434 = vsub.f32 1.5, %v2433
      %v2435 = vmul.f32 %v2430, %v2434
      %vm2436 = vweird.f32 %v1817
      %vm2437 = vweird.f32 %v2430
      %vm2438 = vmor %vm2436, %vm2437
      %v2439 = vsel %vm2438, %v2430, %v2435
      %v2440 = vrsqrt.pop %v1818
      %v2441 = vmul.f32 %v2440, %v1818
      %v2442 = vmul.f32 %v2441, %v2440
      %v2443 = vmul.f32 0.5, %v2442
      %v2444 = vsub.f32 1.5, %v2443
      %v2445 = vmul.f32 %v2440, %v2444
      %vm2446 = vweird.f32 %v1818
      %vm2447 = vweird.f32 %v2440
      %vm2448 = vmor %vm2446, %vm2447
      %v2449 = vsel %vm2448, %v2440, %v2445
      %v2450 = vrsqrt.pop %v1819
      %v2451 = vmul.f32 %v2450, %v1819
      %v2452 = vmul.f32 %v2451, %v2450
      %v2453 = vmul.f32 0.5, %v2452
      %v2454 = vsub.f32 1.5, %v2453
      %v2455 = vmul.f32 %v2450, %v2454
      %vm2456 = vweird.f32 %v1819
      %vm2457 = vweird.f32 %v2450
      %vm2458 = vmor %vm2456, %vm2457
      %v2459 = vsel %vm2458, %v2450, %v2455
      %v2460 = vmul.f32 %v1308, %v1829
      %v2461 = vmul.f32 %v1311, %v1839
      %v2462 = vmul.f32 %v1314, %v1849
      %v2463 = vmul.f32 %v1317, %v1859
      %v2464 = vmul.f32 %v1320, %v1869
      %v2465 = vmul.f32 %v1323, %v1879
      %v2466 = vmul.f32 %v1326, %v1889
      %v2467 = vmul.f32 %v1329, %v1899
      %v2468 = vmul.f32 %v1332, %v1909
      %v2469 = vmul.f32 %v1335, %v1919
      %v2470 = vmul.f32 %v1338, %v1929
      %v2471 = vmul.f32 %v1341, %v1939
      %v2472 = vmul.f32 %v1344, %v1949
      %v2473 = vmul.f32 %v1347, %v1959
      %v2474 = vmul.f32 %v1350, %v1969
      %v2475 = vmul.f32 %v1353, %v1979
      %v2476 = vmul.f32 %v1356, %v1989
      %v2477 = vmul.f32 %v1359, %v1999
      %v2478 = vmul.f32 %v1362, %v2009
      %v2479 = vmul.f32 %v1365, %v2019
      %v2480 = vmul.f32 %v1368, %v2029
      %v2481 = vmul.f32 %v1371, %v2039
      %v2482 = vmul.f32 %v1374, %v2049
      %v2483 = vmul.f32 %v1377, %v2059
      %v2484 = vmul.f32 %v1380, %v2069
      %v2485 = vmul.f32 %v1383, %v2079
      %v2486 = vmul.f32 %v1386, %v2089
      %v2487 = vmul.f32 %v1389, %v2099
      %v2488 = vmul.f32 %v1392, %v2109
      %v2489 = vmul.f32 %v1395, %v2119
      %v2490 = vmul.f32 %v1398, %v2129
      %v2491 = vmul.f32 %v1401, %v2139
      %v2492 = vmul.f32 %v1404, %v2149
      %v2493 = vmul.f32 %v1407, %v2159
      %v2494 = vmul.f32 %v1410, %v2169
      %v2495 = vmul.f32 %v1413, %v2179
      %v2496 = vmul.f32 %v1416, %v2189
      %v2497 = vmul.f32 %v1419, %v2199
      %v2498 = vmul.f32 %v1422, %v2209
      %v2499 = vmul.f32 %v1425, %v2219
      %v2500 = vmul.f32 %v1428, %v2229
      %v2501 = vmul.f32 %v1431, %v2239
      %v2502 = vmul.f32 %v1434, %v2249
      %v2503 = vmul.f32 %v1437, %v2259
      %v2504 = vmul.f32 %v1440, %v2269
      %v2505 = vmul.f32 %v1443, %v2279
      %v2506 = vmul.f32 %v1446, %v2289
      %v2507 = vmul.f32 %v1449, %v2299
      %v2508 = vmul.f32 %v1452, %v2309
      %v2509 = vmul.f32 %v1455, %v2319
      %v2510 = vmul.f32 %v1458, %v2329
      %v2511 = vmul.f32 %v1461, %v2339
      %v2512 = vmul.f32 %v1464, %v2349
      %v2513 = vmul.f32 %v1467, %v2359
      %v2514 = vmul.f32 %v1470, %v2369
      %v2515 = vmul.f32 %v1473, %v2379
      %v2516 = vmul.f32 %v1476, %v2389
      %v2517 = vmul.f32 %v1479, %v2399
      %v2518 = vmul.f32 %v1482, %v2409
      %v2519 = vmul.f32 %v1485, %v2419
      %v2520 = vmul.f32 %v1488, %v2429
      %v2521 = vmul.f32 %v1491, %v2439
      %v2522 = vmul.f32 %v1494, %v2449
      %v2523 = vmul.f32 %v1497, %v2459
      %2524 = vst.msk [vmem:[%s226] sm:$0xff] %vm1563, %v2460
      %2525 = vst.msk [vmem:[%s226 + $0x8] sm:$0xff] %vm1563, %v2461
      %2526 = vst.msk [vmem:[%s226 + $0x10] sm:$0xff] %vm1563, %v2462
      %2527 = vst.msk [vmem:[%s226 + $0x18] sm:$0xff] %vm1563, %v2463
      %2528 = vst.msk [vmem:[%s226 + $0x20] sm:$0xff] %vm1563, %v2464
      %2529 = vst.msk [vmem:[%s226 + $0x28] sm:$0xff] %vm1563, %v2465
      %2530 = vst.msk [vmem:[%s226 + $0x30] sm:$0xff] %vm1563, %v2466
      %2531 = vst.msk [vmem:[%s226 + $0x38] sm:$0xff] %vm1563, %v2467
      %2532 = vst.msk [vmem:[%s226 + $0x40] sm:$0xff] %vm1563, %v2468
      %2533 = vst.msk [vmem:[%s226 + $0x48] sm:$0xff] %vm1563, %v2469
      %2534 = vst.msk [vmem:[%s226 + $0x50] sm:$0xff] %vm1563, %v2470
      %2535 = vst.msk [vmem:[%s226 + $0x58] sm:$0xff] %vm1563, %v2471
      %2536 = vst.msk [vmem:[%s226 + $0x60] sm:$0xff] %vm1563, %v2472
      %2537 = vst.msk [vmem:[%s226 + $0x68] sm:$0xff] %vm1563, %v2473
      %2538 = vst.msk [vmem:[%s226 + $0x70] sm:$0xff] %vm1563, %v2474
      %2539 = vst.msk [vmem:[%s226 + $0x78] sm:$0xff] %vm1563, %v2475
      %2540 = vst.msk [vmem:[%s226 + $0x80] sm:$0xff] %vm1563, %v2476
      %2541 = vst.msk [vmem:[%s226 + $0x88] sm:$0xff] %vm1563, %v2477
      %2542 = vst.msk [vmem:[%s226 + $0x90] sm:$0xff] %vm1563, %v2478
      %2543 = vst.msk [vmem:[%s226 + $0x98] sm:$0xff] %vm1563, %v2479
      %2544 = vst.msk [vmem:[%s226 + $0xa0] sm:$0xff] %vm1563, %v2480
      %2545 = vst.msk [vmem:[%s226 + $0xa8] sm:$0xff] %vm1563, %v2481
      %2546 = vst.msk [vmem:[%s226 + $0xb0] sm:$0xff] %vm1563, %v2482
      %2547 = vst.msk [vmem:[%s226 + $0xb8] sm:$0xff] %vm1563, %v2483
      %2548 = vst.msk [vmem:[%s226 + $0xc0] sm:$0xff] %vm1563, %v2484
      %2549 = vst.msk [vmem:[%s226 + $0xc8] sm:$0xff] %vm1563, %v2485
      %2550 = vst.msk [vmem:[%s226 + $0xd0] sm:$0xff] %vm1563, %v2486
      %2551 = vst.msk [vmem:[%s226 + $0xd8] sm:$0xff] %vm1563, %v2487
      %2552 = vst.msk [vmem:[%s226 + $0xe0] sm:$0xff] %vm1563, %v2488
      %2553 = vst.msk [vmem:[%s226 + $0xe8] sm:$0xff] %vm1563, %v2489
      %2554 = vst.msk [vmem:[%s226 + $0xf0] sm:$0xff] %vm1563, %v2490
      %2555 = vst.msk [vmem:[%s226 + $0xf8] sm:$0xff] %vm1563, %v2491
      %2556 = vst.msk [vmem:[%s226 + $0x100] sm:$0xff] %vm1563, %v2492
      %2557 = vst.msk [vmem:[%s226 + $0x108] sm:$0xff] %vm1563, %v2493
      %2558 = vst.msk [vmem:[%s226 + $0x110] sm:$0xff] %vm1563, %v2494
      %2559 = vst.msk [vmem:[%s226 + $0x118] sm:$0xff] %vm1563, %v2495
      %2560 = vst.msk [vmem:[%s226 + $0x120] sm:$0xff] %vm1563, %v2496
      %2561 = vst.msk [vmem:[%s226 + $0x128] sm:$0xff] %vm1563, %v2497
      %2562 = vst.msk [vmem:[%s226 + $0x130] sm:$0xff] %vm1563, %v2498
      %2563 = vst.msk [vmem:[%s226 + $0x138] sm:$0xff] %vm1563, %v2499
      %2564 = vst.msk [vmem:[%s226 + $0x140] sm:$0xff] %vm1563, %v2500
      %2565 = vst.msk [vmem:[%s226 + $0x148] sm:$0xff] %vm1563, %v2501
      %2566 = vst.msk [vmem:[%s226 + $0x150] sm:$0xff] %vm1563, %v2502
      %2567 = vst.msk [vmem:[%s226 + $0x158] sm:$0xff] %vm1563, %v2503
      %2568 = vst.msk [vmem:[%s226 + $0x160] sm:$0xff] %vm1563, %v2504
      %2569 = vst.msk [vmem:[%s226 + $0x168] sm:$0xff] %vm1563, %v2505
      %2570 = vst.msk [vmem:[%s226 + $0x170] sm:$0xff] %vm1563, %v2506
      %2571 = vst.msk [vmem:[%s226 + $0x178] sm:$0xff] %vm1563, %v2507
      %2572 = vst.msk [vmem:[%s226 + $0x180] sm:$0xff] %vm1563, %v2508
      %2573 = vst.msk [vmem:[%s226 + $0x188] sm:$0xff] %vm1563, %v2509
      %2574 = vst.msk [vmem:[%s226 + $0x190] sm:$0xff] %vm1563, %v2510
      %2575 = vst.msk [vmem:[%s226 + $0x198] sm:$0xff] %vm1563, %v2511
      %2576 = vst.msk [vmem:[%s226 + $0x1a0] sm:$0xff] %vm1563, %v2512
      %2577 = vst.msk [vmem:[%s226 + $0x1a8] sm:$0xff] %vm1563, %v2513
      %2578 = vst.msk [vmem:[%s226 + $0x1b0] sm:$0xff] %vm1563, %v2514
      %2579 = vst.msk [vmem:[%s226 + $0x1b8] sm:$0xff] %vm1563, %v2515
      %2580 = vst.msk [vmem:[%s226 + $0x1c0] sm:$0xff] %vm1563, %v2516
      %2581 = vst.msk [vmem:[%s226 + $0x1c8] sm:$0xff] %vm1563, %v2517
      %2582 = vst.msk [vmem:[%s226 + $0x1d0] sm:$0xff] %vm1563, %v2518
      %2583 = vst.msk [vmem:[%s226 + $0x1d8] sm:$0xff] %vm1563, %v2519
      %2584 = vst.msk [vmem:[%s226 + $0x1e0] sm:$0xff] %vm1563, %v2520
      %2585 = vst.msk [vmem:[%s226 + $0x1e8] sm:$0xff] %vm1563, %v2521
      %2586 = vst.msk [vmem:[%s226 + $0x1f0] sm:$0xff] %vm1563, %v2522
      %2587 = vst.msk [vmem:[%s226 + $0x1f8] sm:$0xff] %vm1563, %v2523
      %s2588 = smul.u32 64, %s16
      %p2589 = scmp.lt.s32.totalorder %s2588, 127
      %s2590 = scalar_select %p2589, %s2588, 127
      %s2591 = smul.addr %s2590, 8
      %s2592 = scalar_lea.vmem %s5, %s2591
      // Predicated region
      $region41: #{tpu_custom_call.1} parent=39 // pred_check
        %p2593 = pneg %p144
      $region42: #{tpu_custom_call.1} parent=39 // pred_check_branch
        %2595 = sbr.rel (%p2593) target = $region44
      $region43: #{tpu_custom_call.1} parent=39 // pred_region
        %s2596 = smul.u32 64, %s16
      $region44: #{tpu_custom_call.1} parent=39 // pred_fallthru
        _
    $region40: #{tpu_custom_call.1} parent=5 // pred_fallthru
      _
    %p2597 = scmp.le.s32.totalorder 2, %s11
    // Predicated region
    $region45: #{tpu_custom_call.1} parent=5 // pred_check
      %p2598 = pneg %p2597
    $region46: #{tpu_custom_call.1} parent=5 // pred_check_branch
      %2600 = sbr.rel (%p2598) target = $region48
    $region47: #{tpu_custom_call.1} parent=5 // pred_region
      %s2601 = ssub.s32 %s11, 2
      // Predicated region
      $region49: #{tpu_custom_call.1} parent=47 // pred_check
        %p2602 = pneg %p150
      $region50: #{tpu_custom_call.1} parent=47 // pred_check_branch
        %2604 = sbr.rel (%p2602) target = $region52
      $region51: #{tpu_custom_call.1} parent=47 // pred_region
        %s2605 = smul.u32 64, %s17
        %p2606 = scmp.lt.s32.totalorder %s2605, 127
        %s2607 = scalar_select %p2606, %s2605, 127
        %s2608 = smul.addr %s2607, 8
        %s2609 = scalar_lea.vmem %s5, %s2608
      $region52: #{tpu_custom_call.1} parent=47 // pred_fallthru
        _
    $region48: #{tpu_custom_call.1} parent=5 // pred_fallthru
      _
  $region6: #{tpu_custom_call.1} parent=0 // loop_footer
    %s15 = sadd.s32 1, %s11
  $region7: #{tpu_custom_call.1} parent=0 // loop_footer_branch
    %10 = sbr.rel target = $region3
  $region8: #{tpu_custom_call.1} parent=0 // loop_exit
    _

</llo_original>
